<compile_context>
chip_gen: v7x
topology: tpu7x:2x2x1
jax: 0.10.0
libtpu: 0.0.40
codegen_flags: <defaults>
</compile_context>

<pallas_src>
import functools
import numpy as np

import jax
import jax.numpy as jnp
from jax.experimental import pallas as pl
from jax.experimental.pallas import tpu as pltpu

# ----------------------------- configuration --------------------------------
OBS_DIM, ACT_DIM = 8, 4
T, T_COND, T_ACTION = 8, 2, 4
INPUT_DIM = OBS_DIM + ACT_DIM            # 12
ACTION_DIM = ACT_DIM
INPAINT = False
INPUT_LEN = T + T_COND - 1 if INPAINT else T
SAMPLING_STEPS = 5
SIGMA_DATA, SIGMA_MIN, SIGMA_MAX = 0.5, 0.002, 80.0
RHO = 7.0
HIDDEN = 32
COND_DIM = T_COND * OBS_DIM + 9 + 3      # obs history + 9d goal + 3d obstacle
BATCH = 2

# lane-dense padded dims (feature / hidden / cond all padded to 128 lanes)
DP = 128
HP = 128
CP = 128
BT = BATCH * INPUT_LEN                   # 16 rows: whole batch in one block


# --------------------------- scheduler (static) -------------------------------
def karras_sigmas(n, sigma_min, sigma_max, rho):
    ramp = np.linspace(0.0, 1.0, n)
    min_inv = sigma_min ** (1.0 / rho)
    max_inv = sigma_max ** (1.0 / rho)
    sig = (max_inv + ramp * (min_inv - max_inv)) ** rho
    return np.append(sig, 0.0)                     # final sigma = 0


def solver_coeff_table():
    """Static (S, 8) table: [c_in, c_noise, c_skip, c_out, ax, ad, ap, 0].

    x_new = ax * x + ad * denoised + ap * prev_denoised  (DPM-Solver++(2M))
    """
    sigmas = karras_sigmas(SAMPLING_STEPS, SIGMA_MIN, SIGMA_MAX, RHO)
    n = SAMPLING_STEPS
    rows = []
    for i in range(n):
        s_s = float(sigmas[i])
        s_t = float(sigmas[i + 1])
        # EDM preconditioning coefficients
        c_in = 1.0 / np.sqrt(s_s * s_s + SIGMA_DATA * SIGMA_DATA)
        c_noise = 0.25 * np.log(s_s)
        c_skip = SIGMA_DATA * SIGMA_DATA / (s_s * s_s + SIGMA_DATA * SIGMA_DATA)
        c_out = s_s * SIGMA_DATA * c_in
        # DPM-Solver++(2M) update, folded into 3 scalar multipliers
        if i == 0 or i == n - 1 or s_t == 0.0:
            if s_t == 0.0:
                ax, ad, ap = 0.0, 1.0, 0.0
            else:
                h = (-np.log(s_t)) - (-np.log(s_s))
                ax = s_t / s_s
                ad = -(np.exp(-h) - 1.0)
                ap = 0.0
        else:
            s_s1 = float(sigmas[i - 1])
            lam_t, lam_s0, lam_s1 = -np.log(s_t), -np.log(s_s), -np.log(s_s1)
            h = lam_t - lam_s0
            h0 = lam_s0 - lam_s1
            r0 = h0 / h
            phi = np.exp(-h) - 1.0
            ax = s_t / s_s
            ad = -phi - 0.5 * phi / r0
            ap = 0.5 * phi / r0
        rows.append([c_in, c_noise, c_skip, c_out, ax, ad, ap, 0.0])
    return np.asarray(rows, dtype=np.float32)


_COEF_TABLE = solver_coeff_table()


# ------------------------------ Pallas kernel ---------------------------------
def _sampler_kernel(coef_ref,                 # SMEM (S, 8) static step table
                    x0_ref, cond_ref,         # VMEM (BT, DP), (BT, CP)
                    w1_ref, wc_ref, wt_ref, b1_ref, w2_ref, b2_ref,
                    out_ref):                 # VMEM (BT, DP)
    # Loop-invariant conditioning contribution, computed exactly once.
    h_cond = (jnp.dot(cond_ref[...], wc_ref[...],
                      preferred_element_type=jnp.float32)
              + b1_ref[...])                                     # (BT, HP)

    x = x0_ref[...]                                              # (BT, DP)
    prev = jnp.zeros_like(x)

    # Fully unrolled 5-step sampling loop; all weights stay VMEM-resident.
    for step in range(SAMPLING_STEPS):
        c_in = coef_ref[step, 0]
        c_noise = coef_ref[step, 1]
        c_skip = coef_ref[step, 2]
        c_out = coef_ref[step, 3]
        ax = coef_ref[step, 4]
        ad = coef_ref[step, 5]
        ap = coef_ref[step, 6]

        # EDM precondition_inputs (scale_model_input)
        x_in = x * c_in

        # synthetic per-token MLP denoiser (MXU hot path, lane-dense 128 K/N)
        h = jnp.dot(x_in, w1_ref[...], preferred_element_type=jnp.float32)
        h = h + h_cond + c_noise * wt_ref[...]
        h = jax.nn.gelu(h)
        raw = (jnp.dot(h, w2_ref[...], preferred_element_type=jnp.float32)
               + b2_ref[...])                                    # (BT, DP)

        # EDM precondition_outputs (uses the un-scaled sample x)
        den = c_skip * x + c_out * raw

        # DPM-Solver++(2M) multistep update (pre-folded scalars)
        x_new = ax * x + ad * den + ap * prev
        prev = den
        x = x_new

    out_ref[...] = x


def sample_fused(coef, x0p, cond_rows, params):
    """One fused pallas_call running the entire sampling loop."""
    return pl.pallas_call(
        _sampler_kernel,
        out_shape=jax.ShapeDtypeStruct((BT, DP), jnp.float32),
        grid_spec=pltpu.PrefetchScalarGridSpec(
            num_scalar_prefetch=0,
            grid=(1,),
            in_specs=[
                pl.BlockSpec(memory_space=pltpu.SMEM),          # coef table
                pl.BlockSpec((BT, DP), lambda i: (0, 0)),       # x0 (padded)
                pl.BlockSpec((BT, CP), lambda i: (0, 0)),       # cond rows
                pl.BlockSpec((DP, HP), lambda i: (0, 0)),       # w1
                pl.BlockSpec((CP, HP), lambda i: (0, 0)),       # wc
                pl.BlockSpec((1, HP), lambda i: (0, 0)),        # wt
                pl.BlockSpec((1, HP), lambda i: (0, 0)),        # b1
                pl.BlockSpec((HP, DP), lambda i: (0, 0)),       # w2
                pl.BlockSpec((1, DP), lambda i: (0, 0)),        # b2
            ],
            out_specs=pl.BlockSpec((BT, DP), lambda i: (0, 0)),
        ),
        compiler_params=pltpu.CompilerParams(
            dimension_semantics=("arbitrary",)),
    )(coef, x0p, cond_rows,
      params["w1"], params["wc"], params["wt"],
      params["b1"], params["w2"], params["b2"])


# ------------------------------ policy forward --------------------------------
@functools.partial(jax.jit, static_argnums=())
def policy_act(key, obs, goal, obstacle, params):
    """Mirrors DiffusionPolicy.process + forward + act (inference path)."""
    B = obs.shape[0]

    # process(): synthetic Normalizer (deterministic affine scaling)
    obs_s = (obs - 0.1) * 0.5                       # scale_input
    goal_s = goal * 0.25                            # scale_9d_pos
    obst_s = obstacle * 0.25                        # scale_3d_pos
    cond = jnp.concatenate(
        [obs_s.reshape(B, -1), goal_s, obst_s], axis=-1).astype(jnp.float32)

    # expand conditioning to one row per token and pad to lane-dense CP
    cond_rows = jnp.repeat(cond, INPUT_LEN, axis=0)               # (B*T, C)
    cond_rows = jnp.pad(cond_rows, ((0, 0), (0, CP - COND_DIM)))  # (B*T, CP)

    # forward(): x ~ N(0, I); pad feature dim to 128 lanes (zeros stay zero)
    x0 = jax.random.normal(key, (B, INPUT_LEN, INPUT_DIM), dtype=jnp.float32)
    x0p = jnp.pad(x0.reshape(B * INPUT_LEN, INPUT_DIM),
                  ((0, 0), (0, DP - INPUT_DIM)))

    coef = jnp.asarray(_COEF_TABLE)                 # static (S, 8) SMEM table

    # fused: all 5 x (precondition_inputs -> model -> precondition_outputs
    #         -> DPM-Solver++ update) in a single Pallas kernel
    xp = sample_fused(coef, x0p, cond_rows, params)               # (B*T, DP)
    x = xp[:, :INPUT_DIM].reshape(B, INPUT_LEN, INPUT_DIM)

    # apply_conditioning is a no-op for inpaint=False; normalizer.clip +
    # inverse_scale_output:
    x = jnp.clip(x, -1.0, 1.0)
    x = x * params["out_scale"] + params["out_offset"]

    # act(): split action / observation trajectory
    obs_traj = x[:, :, ACTION_DIM:]
    action = x[:, :T_ACTION, :ACTION_DIM]
    return {"action": action, "obs_traj": obs_traj}


# ------------------------------ parameter init --------------------------------
def init_params(key):
    ks = jax.random.split(key, 4)

    def lin(k, fan_in, shape):
        return (jax.random.normal(k, shape, dtype=jnp.float32)
                / np.sqrt(fan_in)).astype(jnp.float32)

    def pad2(a, rows, cols):
        return jnp.pad(a, ((0, rows - a.shape[0]), (0, cols - a.shape[1])))

    w1 = lin(ks[0], INPUT_DIM, (INPUT_DIM, HIDDEN))
    wc = lin(ks[1], COND_DIM, (COND_DIM, HIDDEN))
    wt = lin(ks[2], 1, (1, HIDDEN))
    b1 = jnp.zeros((1, HIDDEN), jnp.float32)
    w2 = lin(ks[3], HIDDEN, (HIDDEN, INPUT_DIM))
    b2 = jnp.zeros((1, INPUT_DIM), jnp.float32)

    return {
        # weights stored pre-padded to lane-dense 128-wide layouts
        "w1": pad2(w1, DP, HP),
        "wc": pad2(wc, CP, HP),
        "wt": pad2(wt, 1, HP),
        "b1": pad2(b1, 1, HP),
        "w2": pad2(w2, HP, DP),
        "b2": pad2(b2, 1, DP),
        # synthetic normalizer inverse_scale_output params
        "out_scale": jnp.linspace(0.5, 1.5, INPUT_DIM, dtype=jnp.float32),
        "out_offset": jnp.linspace(-0.2, 0.2, INPUT_DIM, dtype=jnp.float32),
    }


# ----------------------------------- main --------------------------------------
if __name__ == "__main__":
    root = jax.random.PRNGKey(0)
    k_param, k_obs, k_goal, k_obst, k_noise = jax.random.split(root, 5)

    params = init_params(k_param)
    # obs history (num_envs/B, T_cond, obs_dim), 9d goal, 3d obstacle
    obs = jax.random.normal(k_obs, (BATCH, T_COND, OBS_DIM), dtype=jnp.float32)
    goal = jax.random.normal(k_goal, (BATCH, 9), dtype=jnp.float32)
    obstacle = jax.random.normal(k_obst, (BATCH, 3), dtype=jnp.float32)

    out = policy_act(k_noise, obs, goal, obstacle, params)
    jax.block_until_ready(out)

    assert out["action"].shape == (BATCH, T_ACTION, ACTION_DIM)
    assert out["obs_traj"].shape == (BATCH, INPUT_LEN, OBS_DIM)
    assert bool(jnp.all(jnp.isfinite(out["action"])))
    assert bool(jnp.all(jnp.isfinite(out["obs_traj"])))
    print("KERNEL_OK")
</pallas_src>

<mosaic_0001>
module attributes {stable_mosaic.version = 11 : i64} {
  func.func @_sampler_kernel(%arg0: i32, %arg1: memref<5x8xf32, #tpu.memory_space<smem>>, %arg2: memref<16x128xf32, #tpu.memory_space<vmem>>, %arg3: memref<16x128xf32, #tpu.memory_space<vmem>>, %arg4: memref<128x128xf32, #tpu.memory_space<vmem>>, %arg5: memref<128x128xf32, #tpu.memory_space<vmem>>, %arg6: memref<1x128xf32, #tpu.memory_space<vmem>>, %arg7: memref<1x128xf32, #tpu.memory_space<vmem>>, %arg8: memref<128x128xf32, #tpu.memory_space<vmem>>, %arg9: memref<1x128xf32, #tpu.memory_space<vmem>>, %arg10: memref<16x128xf32, #tpu.memory_space<vmem>>) attributes {dimension_semantics = [#tpu.dimension_semantics<arbitrary>], iteration_bounds = array<i64: 1>, scalar_prefetch = 0 : i64, scratch_operands = 0 : i64, tpu.core_type = #tpu.core_type<tc>, window_params = [{transform_indices = @transform_0, window_bounds = array<i64: 5, 8>}, {pipeline_mode = #tpu.pipeline_mode<synchronous>, transform_indices = @transform_1, window_bounds = array<i64: 16, 128>}, {pipeline_mode = #tpu.pipeline_mode<synchronous>, transform_indices = @transform_2, window_bounds = array<i64: 16, 128>}, {pipeline_mode = #tpu.pipeline_mode<synchronous>, transform_indices = @transform_3, window_bounds = array<i64: 128, 128>}, {pipeline_mode = #tpu.pipeline_mode<synchronous>, transform_indices = @transform_4, window_bounds = array<i64: 128, 128>}, {pipeline_mode = #tpu.pipeline_mode<synchronous>, transform_indices = @transform_5, window_bounds = array<i64: 1, 128>}, {pipeline_mode = #tpu.pipeline_mode<synchronous>, transform_indices = @transform_6, window_bounds = array<i64: 1, 128>}, {pipeline_mode = #tpu.pipeline_mode<synchronous>, transform_indices = @transform_7, window_bounds = array<i64: 128, 128>}, {pipeline_mode = #tpu.pipeline_mode<synchronous>, transform_indices = @transform_8, window_bounds = array<i64: 1, 128>}, {pipeline_mode = #tpu.pipeline_mode<synchronous>, transform_indices = @transform_9, window_bounds = array<i64: 16, 128>}]} {
    %c0 = arith.constant 0 : index
    %c0_0 = arith.constant 0 : index
    %0 = vector.load %arg3[%c0, %c0_0] : memref<16x128xf32, #tpu.memory_space<vmem>>, vector<16x128xf32>
    %c0_1 = arith.constant 0 : index
    %c0_2 = arith.constant 0 : index
    %1 = vector.load %arg5[%c0_1, %c0_2] : memref<128x128xf32, #tpu.memory_space<vmem>>, vector<128x128xf32>
    %cst = arith.constant dense<0.000000e+00> : vector<16x128xf32>
    %2 = tpu.matmul %0, %1, %cst {dimension_numbers = #tpu.dot_dimension_numbers<[1], [0], [0], [1], [0, 0, 1, 1], [], []>} : vector<16x128xf32>, vector<128x128xf32>, vector<16x128xf32> -> vector<16x128xf32>
    %c0_3 = arith.constant 0 : index
    %c0_4 = arith.constant 0 : index
    %3 = vector.load %arg7[%c0_3, %c0_4] : memref<1x128xf32, #tpu.memory_space<vmem>>, vector<1x128xf32>
    %4 = vector.broadcast %3 : vector<1x128xf32> to vector<16x128xf32>
    %5 = arith.addf %2, %4 : vector<16x128xf32>
    %c0_5 = arith.constant 0 : index
    %c0_6 = arith.constant 0 : index
    %6 = vector.load %arg2[%c0_5, %c0_6] : memref<16x128xf32, #tpu.memory_space<vmem>>, vector<16x128xf32>
    %cst_7 = arith.constant 0.000000e+00 : f32
    %7 = vector.broadcast %cst_7 : f32 to vector<16x128xf32>
    %c0_8 = arith.constant 0 : index
    %c0_9 = arith.constant 0 : index
    %8 = memref.load %arg1[%c0_8, %c0_9] : memref<5x8xf32, #tpu.memory_space<smem>>
    %c0_10 = arith.constant 0 : index
    %c1 = arith.constant 1 : index
    %9 = memref.load %arg1[%c0_10, %c1] : memref<5x8xf32, #tpu.memory_space<smem>>
    %c0_11 = arith.constant 0 : index
    %c2 = arith.constant 2 : index
    %10 = memref.load %arg1[%c0_11, %c2] : memref<5x8xf32, #tpu.memory_space<smem>>
    %c0_12 = arith.constant 0 : index
    %c3 = arith.constant 3 : index
    %11 = memref.load %arg1[%c0_12, %c3] : memref<5x8xf32, #tpu.memory_space<smem>>
    %c0_13 = arith.constant 0 : index
    %c4 = arith.constant 4 : index
    %12 = memref.load %arg1[%c0_13, %c4] : memref<5x8xf32, #tpu.memory_space<smem>>
    %c0_14 = arith.constant 0 : index
    %c5 = arith.constant 5 : index
    %13 = memref.load %arg1[%c0_14, %c5] : memref<5x8xf32, #tpu.memory_space<smem>>
    %c0_15 = arith.constant 0 : index
    %c6 = arith.constant 6 : index
    %14 = memref.load %arg1[%c0_15, %c6] : memref<5x8xf32, #tpu.memory_space<smem>>
    %15 = vector.broadcast %8 : f32 to vector<16x128xf32>
    %16 = arith.mulf %6, %15 : vector<16x128xf32>
    %c0_16 = arith.constant 0 : index
    %c0_17 = arith.constant 0 : index
    %17 = vector.load %arg4[%c0_16, %c0_17] : memref<128x128xf32, #tpu.memory_space<vmem>>, vector<128x128xf32>
    %cst_18 = arith.constant dense<0.000000e+00> : vector<16x128xf32>
    %18 = tpu.matmul %16, %17, %cst_18 {dimension_numbers = #tpu.dot_dimension_numbers<[1], [0], [0], [1], [0, 0, 1, 1], [], []>} : vector<16x128xf32>, vector<128x128xf32>, vector<16x128xf32> -> vector<16x128xf32>
    %19 = arith.addf %18, %5 : vector<16x128xf32>
    %c0_19 = arith.constant 0 : index
    %c0_20 = arith.constant 0 : index
    %20 = vector.load %arg6[%c0_19, %c0_20] : memref<1x128xf32, #tpu.memory_space<vmem>>, vector<1x128xf32>
    %21 = vector.broadcast %9 : f32 to vector<1x128xf32>
    %22 = arith.mulf %21, %20 : vector<1x128xf32>
    %23 = vector.broadcast %22 : vector<1x128xf32> to vector<16x128xf32>
    %24 = arith.addf %19, %23 : vector<16x128xf32>
    %25 = arith.mulf %24, %24 : vector<16x128xf32>
    %26 = arith.mulf %24, %25 : vector<16x128xf32>
    %cst_21 = arith.constant 4.471500e-02 : f32
    %27 = vector.broadcast %cst_21 : f32 to vector<16x128xf32>
    %28 = arith.mulf %27, %26 : vector<16x128xf32>
    %29 = arith.addf %24, %28 : vector<16x128xf32>
    %cst_22 = arith.constant 0.797884583 : f32
    %30 = vector.broadcast %cst_22 : f32 to vector<16x128xf32>
    %31 = arith.mulf %30, %29 : vector<16x128xf32>
    %32 = math.tanh %31 : vector<16x128xf32>
    %cst_23 = arith.constant 1.000000e+00 : f32
    %33 = vector.broadcast %cst_23 : f32 to vector<16x128xf32>
    %34 = arith.addf %33, %32 : vector<16x128xf32>
    %cst_24 = arith.constant 5.000000e-01 : f32
    %35 = vector.broadcast %cst_24 : f32 to vector<16x128xf32>
    %36 = arith.mulf %35, %34 : vector<16x128xf32>
    %37 = arith.mulf %24, %36 : vector<16x128xf32>
    %c0_25 = arith.constant 0 : index
    %c0_26 = arith.constant 0 : index
    %38 = vector.load %arg8[%c0_25, %c0_26] : memref<128x128xf32, #tpu.memory_space<vmem>>, vector<128x128xf32>
    %cst_27 = arith.constant dense<0.000000e+00> : vector<16x128xf32>
    %39 = tpu.matmul %37, %38, %cst_27 {dimension_numbers = #tpu.dot_dimension_numbers<[1], [0], [0], [1], [0, 0, 1, 1], [], []>} : vector<16x128xf32>, vector<128x128xf32>, vector<16x128xf32> -> vector<16x128xf32>
    %c0_28 = arith.constant 0 : index
    %c0_29 = arith.constant 0 : index
    %40 = vector.load %arg9[%c0_28, %c0_29] : memref<1x128xf32, #tpu.memory_space<vmem>>, vector<1x128xf32>
    %41 = vector.broadcast %40 : vector<1x128xf32> to vector<16x128xf32>
    %42 = arith.addf %39, %41 : vector<16x128xf32>
    %43 = vector.broadcast %10 : f32 to vector<16x128xf32>
    %44 = arith.mulf %43, %6 : vector<16x128xf32>
    %45 = vector.broadcast %11 : f32 to vector<16x128xf32>
    %46 = arith.mulf %45, %42 : vector<16x128xf32>
    %47 = arith.addf %44, %46 : vector<16x128xf32>
    %48 = vector.broadcast %12 : f32 to vector<16x128xf32>
    %49 = arith.mulf %48, %6 : vector<16x128xf32>
    %50 = vector.broadcast %13 : f32 to vector<16x128xf32>
    %51 = arith.mulf %50, %47 : vector<16x128xf32>
    %52 = arith.addf %49, %51 : vector<16x128xf32>
    %53 = vector.broadcast %14 : f32 to vector<16x128xf32>
    %54 = arith.mulf %53, %7 : vector<16x128xf32>
    %55 = arith.addf %52, %54 : vector<16x128xf32>
    %c1_30 = arith.constant 1 : index
    %c0_31 = arith.constant 0 : index
    %56 = memref.load %arg1[%c1_30, %c0_31] : memref<5x8xf32, #tpu.memory_space<smem>>
    %c1_32 = arith.constant 1 : index
    %c1_33 = arith.constant 1 : index
    %57 = memref.load %arg1[%c1_32, %c1_33] : memref<5x8xf32, #tpu.memory_space<smem>>
    %c1_34 = arith.constant 1 : index
    %c2_35 = arith.constant 2 : index
    %58 = memref.load %arg1[%c1_34, %c2_35] : memref<5x8xf32, #tpu.memory_space<smem>>
    %c1_36 = arith.constant 1 : index
    %c3_37 = arith.constant 3 : index
    %59 = memref.load %arg1[%c1_36, %c3_37] : memref<5x8xf32, #tpu.memory_space<smem>>
    %c1_38 = arith.constant 1 : index
    %c4_39 = arith.constant 4 : index
    %60 = memref.load %arg1[%c1_38, %c4_39] : memref<5x8xf32, #tpu.memory_space<smem>>
    %c1_40 = arith.constant 1 : index
    %c5_41 = arith.constant 5 : index
    %61 = memref.load %arg1[%c1_40, %c5_41] : memref<5x8xf32, #tpu.memory_space<smem>>
    %c1_42 = arith.constant 1 : index
    %c6_43 = arith.constant 6 : index
    %62 = memref.load %arg1[%c1_42, %c6_43] : memref<5x8xf32, #tpu.memory_space<smem>>
    %63 = vector.broadcast %56 : f32 to vector<16x128xf32>
    %64 = arith.mulf %55, %63 : vector<16x128xf32>
    %c0_44 = arith.constant 0 : index
    %c0_45 = arith.constant 0 : index
    %65 = vector.load %arg4[%c0_44, %c0_45] : memref<128x128xf32, #tpu.memory_space<vmem>>, vector<128x128xf32>
    %cst_46 = arith.constant dense<0.000000e+00> : vector<16x128xf32>
    %66 = tpu.matmul %64, %65, %cst_46 {dimension_numbers = #tpu.dot_dimension_numbers<[1], [0], [0], [1], [0, 0, 1, 1], [], []>} : vector<16x128xf32>, vector<128x128xf32>, vector<16x128xf32> -> vector<16x128xf32>
    %67 = arith.addf %66, %5 : vector<16x128xf32>
    %c0_47 = arith.constant 0 : index
    %c0_48 = arith.constant 0 : index
    %68 = vector.load %arg6[%c0_47, %c0_48] : memref<1x128xf32, #tpu.memory_space<vmem>>, vector<1x128xf32>
    %69 = vector.broadcast %57 : f32 to vector<1x128xf32>
    %70 = arith.mulf %69, %68 : vector<1x128xf32>
    %71 = vector.broadcast %70 : vector<1x128xf32> to vector<16x128xf32>
    %72 = arith.addf %67, %71 : vector<16x128xf32>
    %73 = arith.mulf %72, %72 : vector<16x128xf32>
    %74 = arith.mulf %72, %73 : vector<16x128xf32>
    %cst_49 = arith.constant 4.471500e-02 : f32
    %75 = vector.broadcast %cst_49 : f32 to vector<16x128xf32>
    %76 = arith.mulf %75, %74 : vector<16x128xf32>
    %77 = arith.addf %72, %76 : vector<16x128xf32>
    %cst_50 = arith.constant 0.797884583 : f32
    %78 = vector.broadcast %cst_50 : f32 to vector<16x128xf32>
    %79 = arith.mulf %78, %77 : vector<16x128xf32>
    %80 = math.tanh %79 : vector<16x128xf32>
    %cst_51 = arith.constant 1.000000e+00 : f32
    %81 = vector.broadcast %cst_51 : f32 to vector<16x128xf32>
    %82 = arith.addf %81, %80 : vector<16x128xf32>
    %cst_52 = arith.constant 5.000000e-01 : f32
    %83 = vector.broadcast %cst_52 : f32 to vector<16x128xf32>
    %84 = arith.mulf %83, %82 : vector<16x128xf32>
    %85 = arith.mulf %72, %84 : vector<16x128xf32>
    %c0_53 = arith.constant 0 : index
    %c0_54 = arith.constant 0 : index
    %86 = vector.load %arg8[%c0_53, %c0_54] : memref<128x128xf32, #tpu.memory_space<vmem>>, vector<128x128xf32>
    %cst_55 = arith.constant dense<0.000000e+00> : vector<16x128xf32>
    %87 = tpu.matmul %85, %86, %cst_55 {dimension_numbers = #tpu.dot_dimension_numbers<[1], [0], [0], [1], [0, 0, 1, 1], [], []>} : vector<16x128xf32>, vector<128x128xf32>, vector<16x128xf32> -> vector<16x128xf32>
    %c0_56 = arith.constant 0 : index
    %c0_57 = arith.constant 0 : index
    %88 = vector.load %arg9[%c0_56, %c0_57] : memref<1x128xf32, #tpu.memory_space<vmem>>, vector<1x128xf32>
    %89 = vector.broadcast %88 : vector<1x128xf32> to vector<16x128xf32>
    %90 = arith.addf %87, %89 : vector<16x128xf32>
    %91 = vector.broadcast %58 : f32 to vector<16x128xf32>
    %92 = arith.mulf %91, %55 : vector<16x128xf32>
    %93 = vector.broadcast %59 : f32 to vector<16x128xf32>
    %94 = arith.mulf %93, %90 : vector<16x128xf32>
    %95 = arith.addf %92, %94 : vector<16x128xf32>
    %96 = vector.broadcast %60 : f32 to vector<16x128xf32>
    %97 = arith.mulf %96, %55 : vector<16x128xf32>
    %98 = vector.broadcast %61 : f32 to vector<16x128xf32>
    %99 = arith.mulf %98, %95 : vector<16x128xf32>
    %100 = arith.addf %97, %99 : vector<16x128xf32>
    %101 = vector.broadcast %62 : f32 to vector<16x128xf32>
    %102 = arith.mulf %101, %47 : vector<16x128xf32>
    %103 = arith.addf %100, %102 : vector<16x128xf32>
    %c2_58 = arith.constant 2 : index
    %c0_59 = arith.constant 0 : index
    %104 = memref.load %arg1[%c2_58, %c0_59] : memref<5x8xf32, #tpu.memory_space<smem>>
    %c2_60 = arith.constant 2 : index
    %c1_61 = arith.constant 1 : index
    %105 = memref.load %arg1[%c2_60, %c1_61] : memref<5x8xf32, #tpu.memory_space<smem>>
    %c2_62 = arith.constant 2 : index
    %c2_63 = arith.constant 2 : index
    %106 = memref.load %arg1[%c2_62, %c2_63] : memref<5x8xf32, #tpu.memory_space<smem>>
    %c2_64 = arith.constant 2 : index
    %c3_65 = arith.constant 3 : index
    %107 = memref.load %arg1[%c2_64, %c3_65] : memref<5x8xf32, #tpu.memory_space<smem>>
    %c2_66 = arith.constant 2 : index
    %c4_67 = arith.constant 4 : index
    %108 = memref.load %arg1[%c2_66, %c4_67] : memref<5x8xf32, #tpu.memory_space<smem>>
    %c2_68 = arith.constant 2 : index
    %c5_69 = arith.constant 5 : index
    %109 = memref.load %arg1[%c2_68, %c5_69] : memref<5x8xf32, #tpu.memory_space<smem>>
    %c2_70 = arith.constant 2 : index
    %c6_71 = arith.constant 6 : index
    %110 = memref.load %arg1[%c2_70, %c6_71] : memref<5x8xf32, #tpu.memory_space<smem>>
    %111 = vector.broadcast %104 : f32 to vector<16x128xf32>
    %112 = arith.mulf %103, %111 : vector<16x128xf32>
    %c0_72 = arith.constant 0 : index
    %c0_73 = arith.constant 0 : index
    %113 = vector.load %arg4[%c0_72, %c0_73] : memref<128x128xf32, #tpu.memory_space<vmem>>, vector<128x128xf32>
    %cst_74 = arith.constant dense<0.000000e+00> : vector<16x128xf32>
    %114 = tpu.matmul %112, %113, %cst_74 {dimension_numbers = #tpu.dot_dimension_numbers<[1], [0], [0], [1], [0, 0, 1, 1], [], []>} : vector<16x128xf32>, vector<128x128xf32>, vector<16x128xf32> -> vector<16x128xf32>
    %115 = arith.addf %114, %5 : vector<16x128xf32>
    %c0_75 = arith.constant 0 : index
    %c0_76 = arith.constant 0 : index
    %116 = vector.load %arg6[%c0_75, %c0_76] : memref<1x128xf32, #tpu.memory_space<vmem>>, vector<1x128xf32>
    %117 = vector.broadcast %105 : f32 to vector<1x128xf32>
    %118 = arith.mulf %117, %116 : vector<1x128xf32>
    %119 = vector.broadcast %118 : vector<1x128xf32> to vector<16x128xf32>
    %120 = arith.addf %115, %119 : vector<16x128xf32>
    %121 = arith.mulf %120, %120 : vector<16x128xf32>
    %122 = arith.mulf %120, %121 : vector<16x128xf32>
    %cst_77 = arith.constant 4.471500e-02 : f32
    %123 = vector.broadcast %cst_77 : f32 to vector<16x128xf32>
    %124 = arith.mulf %123, %122 : vector<16x128xf32>
    %125 = arith.addf %120, %124 : vector<16x128xf32>
    %cst_78 = arith.constant 0.797884583 : f32
    %126 = vector.broadcast %cst_78 : f32 to vector<16x128xf32>
    %127 = arith.mulf %126, %125 : vector<16x128xf32>
    %128 = math.tanh %127 : vector<16x128xf32>
    %cst_79 = arith.constant 1.000000e+00 : f32
    %129 = vector.broadcast %cst_79 : f32 to vector<16x128xf32>
    %130 = arith.addf %129, %128 : vector<16x128xf32>
    %cst_80 = arith.constant 5.000000e-01 : f32
    %131 = vector.broadcast %cst_80 : f32 to vector<16x128xf32>
    %132 = arith.mulf %131, %130 : vector<16x128xf32>
    %133 = arith.mulf %120, %132 : vector<16x128xf32>
    %c0_81 = arith.constant 0 : index
    %c0_82 = arith.constant 0 : index
    %134 = vector.load %arg8[%c0_81, %c0_82] : memref<128x128xf32, #tpu.memory_space<vmem>>, vector<128x128xf32>
    %cst_83 = arith.constant dense<0.000000e+00> : vector<16x128xf32>
    %135 = tpu.matmul %133, %134, %cst_83 {dimension_numbers = #tpu.dot_dimension_numbers<[1], [0], [0], [1], [0, 0, 1, 1], [], []>} : vector<16x128xf32>, vector<128x128xf32>, vector<16x128xf32> -> vector<16x128xf32>
    %c0_84 = arith.constant 0 : index
    %c0_85 = arith.constant 0 : index
    %136 = vector.load %arg9[%c0_84, %c0_85] : memref<1x128xf32, #tpu.memory_space<vmem>>, vector<1x128xf32>
    %137 = vector.broadcast %136 : vector<1x128xf32> to vector<16x128xf32>
    %138 = arith.addf %135, %137 : vector<16x128xf32>
    %139 = vector.broadcast %106 : f32 to vector<16x128xf32>
    %140 = arith.mulf %139, %103 : vector<16x128xf32>
    %141 = vector.broadcast %107 : f32 to vector<16x128xf32>
    %142 = arith.mulf %141, %138 : vector<16x128xf32>
    %143 = arith.addf %140, %142 : vector<16x128xf32>
    %144 = vector.broadcast %108 : f32 to vector<16x128xf32>
    %145 = arith.mulf %144, %103 : vector<16x128xf32>
    %146 = vector.broadcast %109 : f32 to vector<16x128xf32>
    %147 = arith.mulf %146, %143 : vector<16x128xf32>
    %148 = arith.addf %145, %147 : vector<16x128xf32>
    %149 = vector.broadcast %110 : f32 to vector<16x128xf32>
    %150 = arith.mulf %149, %95 : vector<16x128xf32>
    %151 = arith.addf %148, %150 : vector<16x128xf32>
    %c3_86 = arith.constant 3 : index
    %c0_87 = arith.constant 0 : index
    %152 = memref.load %arg1[%c3_86, %c0_87] : memref<5x8xf32, #tpu.memory_space<smem>>
    %c3_88 = arith.constant 3 : index
    %c1_89 = arith.constant 1 : index
    %153 = memref.load %arg1[%c3_88, %c1_89] : memref<5x8xf32, #tpu.memory_space<smem>>
    %c3_90 = arith.constant 3 : index
    %c2_91 = arith.constant 2 : index
    %154 = memref.load %arg1[%c3_90, %c2_91] : memref<5x8xf32, #tpu.memory_space<smem>>
    %c3_92 = arith.constant 3 : index
    %c3_93 = arith.constant 3 : index
    %155 = memref.load %arg1[%c3_92, %c3_93] : memref<5x8xf32, #tpu.memory_space<smem>>
    %c3_94 = arith.constant 3 : index
    %c4_95 = arith.constant 4 : index
    %156 = memref.load %arg1[%c3_94, %c4_95] : memref<5x8xf32, #tpu.memory_space<smem>>
    %c3_96 = arith.constant 3 : index
    %c5_97 = arith.constant 5 : index
    %157 = memref.load %arg1[%c3_96, %c5_97] : memref<5x8xf32, #tpu.memory_space<smem>>
    %c3_98 = arith.constant 3 : index
    %c6_99 = arith.constant 6 : index
    %158 = memref.load %arg1[%c3_98, %c6_99] : memref<5x8xf32, #tpu.memory_space<smem>>
    %159 = vector.broadcast %152 : f32 to vector<16x128xf32>
    %160 = arith.mulf %151, %159 : vector<16x128xf32>
    %c0_100 = arith.constant 0 : index
    %c0_101 = arith.constant 0 : index
    %161 = vector.load %arg4[%c0_100, %c0_101] : memref<128x128xf32, #tpu.memory_space<vmem>>, vector<128x128xf32>
    %cst_102 = arith.constant dense<0.000000e+00> : vector<16x128xf32>
    %162 = tpu.matmul %160, %161, %cst_102 {dimension_numbers = #tpu.dot_dimension_numbers<[1], [0], [0], [1], [0, 0, 1, 1], [], []>} : vector<16x128xf32>, vector<128x128xf32>, vector<16x128xf32> -> vector<16x128xf32>
    %163 = arith.addf %162, %5 : vector<16x128xf32>
    %c0_103 = arith.constant 0 : index
    %c0_104 = arith.constant 0 : index
    %164 = vector.load %arg6[%c0_103, %c0_104] : memref<1x128xf32, #tpu.memory_space<vmem>>, vector<1x128xf32>
    %165 = vector.broadcast %153 : f32 to vector<1x128xf32>
    %166 = arith.mulf %165, %164 : vector<1x128xf32>
    %167 = vector.broadcast %166 : vector<1x128xf32> to vector<16x128xf32>
    %168 = arith.addf %163, %167 : vector<16x128xf32>
    %169 = arith.mulf %168, %168 : vector<16x128xf32>
    %170 = arith.mulf %168, %169 : vector<16x128xf32>
    %cst_105 = arith.constant 4.471500e-02 : f32
    %171 = vector.broadcast %cst_105 : f32 to vector<16x128xf32>
    %172 = arith.mulf %171, %170 : vector<16x128xf32>
    %173 = arith.addf %168, %172 : vector<16x128xf32>
    %cst_106 = arith.constant 0.797884583 : f32
    %174 = vector.broadcast %cst_106 : f32 to vector<16x128xf32>
    %175 = arith.mulf %174, %173 : vector<16x128xf32>
    %176 = math.tanh %175 : vector<16x128xf32>
    %cst_107 = arith.constant 1.000000e+00 : f32
    %177 = vector.broadcast %cst_107 : f32 to vector<16x128xf32>
    %178 = arith.addf %177, %176 : vector<16x128xf32>
    %cst_108 = arith.constant 5.000000e-01 : f32
    %179 = vector.broadcast %cst_108 : f32 to vector<16x128xf32>
    %180 = arith.mulf %179, %178 : vector<16x128xf32>
    %181 = arith.mulf %168, %180 : vector<16x128xf32>
    %c0_109 = arith.constant 0 : index
    %c0_110 = arith.constant 0 : index
    %182 = vector.load %arg8[%c0_109, %c0_110] : memref<128x128xf32, #tpu.memory_space<vmem>>, vector<128x128xf32>
    %cst_111 = arith.constant dense<0.000000e+00> : vector<16x128xf32>
    %183 = tpu.matmul %181, %182, %cst_111 {dimension_numbers = #tpu.dot_dimension_numbers<[1], [0], [0], [1], [0, 0, 1, 1], [], []>} : vector<16x128xf32>, vector<128x128xf32>, vector<16x128xf32> -> vector<16x128xf32>
    %c0_112 = arith.constant 0 : index
    %c0_113 = arith.constant 0 : index
    %184 = vector.load %arg9[%c0_112, %c0_113] : memref<1x128xf32, #tpu.memory_space<vmem>>, vector<1x128xf32>
    %185 = vector.broadcast %184 : vector<1x128xf32> to vector<16x128xf32>
    %186 = arith.addf %183, %185 : vector<16x128xf32>
    %187 = vector.broadcast %154 : f32 to vector<16x128xf32>
    %188 = arith.mulf %187, %151 : vector<16x128xf32>
    %189 = vector.broadcast %155 : f32 to vector<16x128xf32>
    %190 = arith.mulf %189, %186 : vector<16x128xf32>
    %191 = arith.addf %188, %190 : vector<16x128xf32>
    %192 = vector.broadcast %156 : f32 to vector<16x128xf32>
    %193 = arith.mulf %192, %151 : vector<16x128xf32>
    %194 = vector.broadcast %157 : f32 to vector<16x128xf32>
    %195 = arith.mulf %194, %191 : vector<16x128xf32>
    %196 = arith.addf %193, %195 : vector<16x128xf32>
    %197 = vector.broadcast %158 : f32 to vector<16x128xf32>
    %198 = arith.mulf %197, %143 : vector<16x128xf32>
    %199 = arith.addf %196, %198 : vector<16x128xf32>
    %c4_114 = arith.constant 4 : index
    %c0_115 = arith.constant 0 : index
    %200 = memref.load %arg1[%c4_114, %c0_115] : memref<5x8xf32, #tpu.memory_space<smem>>
    %c4_116 = arith.constant 4 : index
    %c1_117 = arith.constant 1 : index
    %201 = memref.load %arg1[%c4_116, %c1_117] : memref<5x8xf32, #tpu.memory_space<smem>>
    %c4_118 = arith.constant 4 : index
    %c2_119 = arith.constant 2 : index
    %202 = memref.load %arg1[%c4_118, %c2_119] : memref<5x8xf32, #tpu.memory_space<smem>>
    %c4_120 = arith.constant 4 : index
    %c3_121 = arith.constant 3 : index
    %203 = memref.load %arg1[%c4_120, %c3_121] : memref<5x8xf32, #tpu.memory_space<smem>>
    %c4_122 = arith.constant 4 : index
    %c4_123 = arith.constant 4 : index
    %204 = memref.load %arg1[%c4_122, %c4_123] : memref<5x8xf32, #tpu.memory_space<smem>>
    %c4_124 = arith.constant 4 : index
    %c5_125 = arith.constant 5 : index
    %205 = memref.load %arg1[%c4_124, %c5_125] : memref<5x8xf32, #tpu.memory_space<smem>>
    %c4_126 = arith.constant 4 : index
    %c6_127 = arith.constant 6 : index
    %206 = memref.load %arg1[%c4_126, %c6_127] : memref<5x8xf32, #tpu.memory_space<smem>>
    %207 = vector.broadcast %200 : f32 to vector<16x128xf32>
    %208 = arith.mulf %199, %207 : vector<16x128xf32>
    %c0_128 = arith.constant 0 : index
    %c0_129 = arith.constant 0 : index
    %209 = vector.load %arg4[%c0_128, %c0_129] : memref<128x128xf32, #tpu.memory_space<vmem>>, vector<128x128xf32>
    %cst_130 = arith.constant dense<0.000000e+00> : vector<16x128xf32>
    %210 = tpu.matmul %208, %209, %cst_130 {dimension_numbers = #tpu.dot_dimension_numbers<[1], [0], [0], [1], [0, 0, 1, 1], [], []>} : vector<16x128xf32>, vector<128x128xf32>, vector<16x128xf32> -> vector<16x128xf32>
    %211 = arith.addf %210, %5 : vector<16x128xf32>
    %c0_131 = arith.constant 0 : index
    %c0_132 = arith.constant 0 : index
    %212 = vector.load %arg6[%c0_131, %c0_132] : memref<1x128xf32, #tpu.memory_space<vmem>>, vector<1x128xf32>
    %213 = vector.broadcast %201 : f32 to vector<1x128xf32>
    %214 = arith.mulf %213, %212 : vector<1x128xf32>
    %215 = vector.broadcast %214 : vector<1x128xf32> to vector<16x128xf32>
    %216 = arith.addf %211, %215 : vector<16x128xf32>
    %217 = arith.mulf %216, %216 : vector<16x128xf32>
    %218 = arith.mulf %216, %217 : vector<16x128xf32>
    %cst_133 = arith.constant 4.471500e-02 : f32
    %219 = vector.broadcast %cst_133 : f32 to vector<16x128xf32>
    %220 = arith.mulf %219, %218 : vector<16x128xf32>
    %221 = arith.addf %216, %220 : vector<16x128xf32>
    %cst_134 = arith.constant 0.797884583 : f32
    %222 = vector.broadcast %cst_134 : f32 to vector<16x128xf32>
    %223 = arith.mulf %222, %221 : vector<16x128xf32>
    %224 = math.tanh %223 : vector<16x128xf32>
    %cst_135 = arith.constant 1.000000e+00 : f32
    %225 = vector.broadcast %cst_135 : f32 to vector<16x128xf32>
    %226 = arith.addf %225, %224 : vector<16x128xf32>
    %cst_136 = arith.constant 5.000000e-01 : f32
    %227 = vector.broadcast %cst_136 : f32 to vector<16x128xf32>
    %228 = arith.mulf %227, %226 : vector<16x128xf32>
    %229 = arith.mulf %216, %228 : vector<16x128xf32>
    %c0_137 = arith.constant 0 : index
    %c0_138 = arith.constant 0 : index
    %230 = vector.load %arg8[%c0_137, %c0_138] : memref<128x128xf32, #tpu.memory_space<vmem>>, vector<128x128xf32>
    %cst_139 = arith.constant dense<0.000000e+00> : vector<16x128xf32>
    %231 = tpu.matmul %229, %230, %cst_139 {dimension_numbers = #tpu.dot_dimension_numbers<[1], [0], [0], [1], [0, 0, 1, 1], [], []>} : vector<16x128xf32>, vector<128x128xf32>, vector<16x128xf32> -> vector<16x128xf32>
    %c0_140 = arith.constant 0 : index
    %c0_141 = arith.constant 0 : index
    %232 = vector.load %arg9[%c0_140, %c0_141] : memref<1x128xf32, #tpu.memory_space<vmem>>, vector<1x128xf32>
    %233 = vector.broadcast %232 : vector<1x128xf32> to vector<16x128xf32>
    %234 = arith.addf %231, %233 : vector<16x128xf32>
    %235 = vector.broadcast %202 : f32 to vector<16x128xf32>
    %236 = arith.mulf %235, %199 : vector<16x128xf32>
    %237 = vector.broadcast %203 : f32 to vector<16x128xf32>
    %238 = arith.mulf %237, %234 : vector<16x128xf32>
    %239 = arith.addf %236, %238 : vector<16x128xf32>
    %240 = vector.broadcast %204 : f32 to vector<16x128xf32>
    %241 = arith.mulf %240, %199 : vector<16x128xf32>
    %242 = vector.broadcast %205 : f32 to vector<16x128xf32>
    %243 = arith.mulf %242, %239 : vector<16x128xf32>
    %244 = arith.addf %241, %243 : vector<16x128xf32>
    %245 = vector.broadcast %206 : f32 to vector<16x128xf32>
    %246 = arith.mulf %245, %191 : vector<16x128xf32>
    %247 = arith.addf %244, %246 : vector<16x128xf32>
    %c0_142 = arith.constant 0 : index
    %c0_143 = arith.constant 0 : index
    %248 = vector.load %arg10[%c0_142, %c0_143] : memref<16x128xf32, #tpu.memory_space<vmem>>, vector<16x128xf32>
    tpu.vector_store %arg10[%c0_142, %c0_143], %247 {strides = array<i32>} : memref<16x128xf32, #tpu.memory_space<vmem>>, vector<16x128xf32>,
    return
  }
  func.func @transform_0(%arg0: i32) -> (i32, i32) {
    %c0_i32 = arith.constant 0 : i32
    %c0_i32_0 = arith.constant 0 : i32
    %c0_i32_1 = arith.constant 0 : i32
    return %c0_i32, %c0_i32_0 : i32, i32
  }
  func.func @transform_1(%arg0: i32) -> (i32, i32) {
    %c0_i32 = arith.constant 0 : i32
    %c0_i32_0 = arith.constant 0 : i32
    %c0_i32_1 = arith.constant 0 : i32
    return %c0_i32, %c0_i32_0 : i32, i32
  }
  func.func @transform_2(%arg0: i32) -> (i32, i32) {
    %c0_i32 = arith.constant 0 : i32
    %c0_i32_0 = arith.constant 0 : i32
    %c0_i32_1 = arith.constant 0 : i32
    return %c0_i32, %c0_i32_0 : i32, i32
  }
  func.func @transform_3(%arg0: i32) -> (i32, i32) {
    %c0_i32 = arith.constant 0 : i32
    %c0_i32_0 = arith.constant 0 : i32
    %c0_i32_1 = arith.constant 0 : i32
    return %c0_i32, %c0_i32_0 : i32, i32
  }
  func.func @transform_4(%arg0: i32) -> (i32, i32) {
    %c0_i32 = arith.constant 0 : i32
    %c0_i32_0 = arith.constant 0 : i32
    %c0_i32_1 = arith.constant 0 : i32
    return %c0_i32, %c0_i32_0 : i32, i32
  }
  func.func @transform_5(%arg0: i32) -> (i32, i32) {
    %c0_i32 = arith.constant 0 : i32
    %c0_i32_0 = arith.constant 0 : i32
    %c0_i32_1 = arith.constant 0 : i32
    return %c0_i32, %c0_i32_0 : i32, i32
  }
  func.func @transform_6(%arg0: i32) -> (i32, i32) {
    %c0_i32 = arith.constant 0 : i32
    %c0_i32_0 = arith.constant 0 : i32
    %c0_i32_1 = arith.constant 0 : i32
    return %c0_i32, %c0_i32_0 : i32, i32
  }
  func.func @transform_7(%arg0: i32) -> (i32, i32) {
    %c0_i32 = arith.constant 0 : i32
    %c0_i32_0 = arith.constant 0 : i32
    %c0_i32_1 = arith.constant 0 : i32
    return %c0_i32, %c0_i32_0 : i32, i32
  }
  func.func @transform_8(%arg0: i32) -> (i32, i32) {
    %c0_i32 = arith.constant 0 : i32
    %c0_i32_0 = arith.constant 0 : i32
    %c0_i32_1 = arith.constant 0 : i32
    return %c0_i32, %c0_i32_0 : i32, i32
  }
  func.func @transform_9(%arg0: i32) -> (i32, i32) {
    %c0_i32 = arith.constant 0 : i32
    %c0_i32_0 = arith.constant 0 : i32
    %c0_i32_1 = arith.constant 0 : i32
    return %c0_i32, %c0_i32_0 : i32, i32
  }
}

</mosaic_0001>

<llo_original>
// kernel: policy_act.1
$region0: #{policy_act.1}
  #allocation0 [shape = 'u32[]', space=smem, size = 0x4, offset = 0x4, fixed_abs, tag = 'smem constant byte address 0x4 - core index']
  #allocation1 [shape = 'u32[144,128]{1,0:T(1,128)}', space=vmem, size = 0x12000, scoped, tag = 'internal scratch']
  %s0 = inlined_call_operand.vmem [shape: f32[5,8], index: 0, kind: input, shape index: {}]
  %s1 = inlined_call_operand.vmem [shape: f32[16,128], index: 1, kind: input, shape index: {}]
  %s2 = inlined_call_operand.vmem [shape: f32[16,128], index: 2, kind: input, shape index: {}]
  %s3 = inlined_call_operand.vmem [shape: f32[128,128], index: 3, kind: input, shape index: {}]
  %s4 = inlined_call_operand.hbm [shape: f32[128,128], index: 4, kind: input, shape index: {}]
  %s5 = inlined_call_operand.vmem [shape: f32[1,128], index: 5, kind: input, shape index: {}]
  %s6 = inlined_call_operand.vmem [shape: f32[1,128], index: 6, kind: input, shape index: {}]
  %s7 = inlined_call_operand.hbm [shape: f32[128,128], index: 7, kind: input, shape index: {}]
  %s8 = inlined_call_operand.vmem [shape: f32[1,128], index: 8, kind: input, shape index: {}]
  %s9 = inlined_call_operand.vmem [shape: f32[16,128], index: 9, kind: output, shape index: {}]
  %s10 = sld [smem:[#allocation0]]
  $region58: #{policy_act.1} parent=0
    _
  %s12 = ssub.s32 1, %s10
  %s13 = scalar_select 0, %s12, %s10
  $region1: #{policy_act.1} parent=0
    #allocation2 [shape = 'u8[4096]{0}', space=smem, size = 0x1000, scoped, tag = 'input window, operand 0, single buffered']
    #allocation3 [shape = 's32[1]{0}', space=sflag, size = 0x4, scoped, tag = 'scoped memory for policy_act.1']
    #allocation4 [shape = 's32[1]{0}', space=sflag, size = 0x4, scoped, tag = 'scoped memory for policy_act.1']
    #allocation5 [shape = 'u8[65536]{0}', space=vmem, size = 0x10000, scoped, tag = 'input window, operand 4, single buffered']
    #allocation6 [shape = 'u8[65536]{0}', space=vmem, size = 0x10000, scoped, tag = 'input window, operand 7, single buffered']
    #allocation7 [shape = 's32[1]{0}', space=sflag, size = 0x4, scoped, tag = 'scoped memory for policy_act.1']
    %14 = vsyncpa [#allocation4], 0
    %15 = vsyncpa [#allocation3], 0
    %16 = vsyncpa [#allocation7], 0
    // Predicated region
    $region2: #{policy_act.1} parent=1 // pred_check
      _
    $region3: #{policy_act.1} parent=1 // pred_check_branch
      %18 = sbr.rel (0) target = $region5
    $region4: #{policy_act.1} parent=1 // pred_region
      %s20 = ssub.s32 128, 128
      %21 = vsyncadd [#allocation4], %s20
      %s23 = sshll.u32 %s0, 4
      %s24 = int_to_ptr.vmem [resolvable:$true] %s23
      %26 = dma.vmem_to_smem %s24, 128, [#allocation2], [#allocation4]
    $region5: #{policy_act.1} parent=1 // pred_fallthru
      _
    // Predicated region
    $region6: #{policy_act.1} parent=1 // pred_check
      _
    $region7: #{policy_act.1} parent=1 // pred_check_branch
      %28 = sbr.rel (0) target = $region9
    $region8: #{policy_act.1} parent=1 // pred_region
      _
    $region9: #{policy_act.1} parent=1 // pred_fallthru
      _
    // Predicated region
    $region10: #{policy_act.1} parent=1 // pred_check
      _
    $region11: #{policy_act.1} parent=1 // pred_check_branch
      %30 = sbr.rel (0) target = $region13
    $region12: #{policy_act.1} parent=1 // pred_region
      _
    $region13: #{policy_act.1} parent=1 // pred_fallthru
      _
    // Predicated region
    $region14: #{policy_act.1} parent=1 // pred_check
      _
    $region15: #{policy_act.1} parent=1 // pred_check_branch
      %32 = sbr.rel (0) target = $region17
    $region16: #{policy_act.1} parent=1 // pred_region
      _
    $region17: #{policy_act.1} parent=1 // pred_fallthru
      _
    // Predicated region
    $region18: #{policy_act.1} parent=1 // pred_check
      _
    $region19: #{policy_act.1} parent=1 // pred_check_branch
      %34 = sbr.rel (0) target = $region21
    $region20: #{policy_act.1} parent=1 // pred_region
      %s36 = ssub.s32 2048, 2048
      %37 = vsyncadd [#allocation3], %s36
      %s38 = sshll.u32 [#allocation5], 4
      %s39 = int_to_ptr.vmem [resolvable:$true] %s38
      %44 = dma.hbm_to_vmem [thread:$0]  %s4, 2048, %s39, [#allocation3], 128, 128, 8
    $region21: #{policy_act.1} parent=1 // pred_fallthru
      _
    // Predicated region
    $region22: #{policy_act.1} parent=1 // pred_check
      _
    $region23: #{policy_act.1} parent=1 // pred_check_branch
      %46 = sbr.rel (0) target = $region25
    $region24: #{policy_act.1} parent=1 // pred_region
      _
    $region25: #{policy_act.1} parent=1 // pred_fallthru
      _
    // Predicated region
    $region26: #{policy_act.1} parent=1 // pred_check
      _
    $region27: #{policy_act.1} parent=1 // pred_check_branch
      %48 = sbr.rel (0) target = $region29
    $region28: #{policy_act.1} parent=1 // pred_region
      _
    $region29: #{policy_act.1} parent=1 // pred_fallthru
      _
    // Predicated region
    $region30: #{policy_act.1} parent=1 // pred_check
      _
    $region31: #{policy_act.1} parent=1 // pred_check_branch
      %50 = sbr.rel (0) target = $region33
    $region32: #{policy_act.1} parent=1 // pred_region
      %s52 = ssub.s32 2048, 2048
      %53 = vsyncadd [#allocation7], %s52
      %s54 = sshll.u32 [#allocation6], 4
      %s55 = int_to_ptr.vmem [resolvable:$true] %s54
      %60 = dma.hbm_to_vmem [thread:$0]  %s7, 2048, %s55, [#allocation7], 128, 128, 8
    $region33: #{policy_act.1} parent=1 // pred_fallthru
      _
    // Predicated region
    $region34: #{policy_act.1} parent=1 // pred_check
      _
    $region35: #{policy_act.1} parent=1 // pred_check_branch
      %62 = sbr.rel (0) target = $region37
    $region36: #{policy_act.1} parent=1 // pred_region
      _
    $region37: #{policy_act.1} parent=1 // pred_fallthru
      _
    // Predicated region
    $region38: #{policy_act.1} parent=1 // pred_check
      _
    $region39: #{policy_act.1} parent=1 // pred_check_branch
      %64 = sbr.rel (0) target = $region41
    $region40: #{policy_act.1} parent=1 // pred_region
      %65 = dma.done [#allocation4], 128
    $region41: #{policy_act.1} parent=1 // pred_fallthru
      _
    // Predicated region
    $region42: #{policy_act.1} parent=1 // pred_check
      _
    $region43: #{policy_act.1} parent=1 // pred_check_branch
      %67 = sbr.rel (0) target = $region45
    $region44: #{policy_act.1} parent=1 // pred_region
      %68 = dma.done [#allocation3], 2048
    $region45: #{policy_act.1} parent=1 // pred_fallthru
      _
    // Predicated region
    $region46: #{policy_act.1} parent=1 // pred_check
      _
    $region47: #{policy_act.1} parent=1 // pred_check_branch
      %70 = sbr.rel (0) target = $region49
    $region48: #{policy_act.1} parent=1 // pred_region
      %71 = dma.done [#allocation7], 2048
    $region49: #{policy_act.1} parent=1 // pred_fallthru
      _
    %72 = sfence
    %v73 = vld [vmem:[%s2] sm:$0xff]
    %v74 = vld [vmem:[%s2 + $0x8] sm:$0xff]
    %v75 = vld [vmem:[#allocation5] sm:$0xff]
    %v76 = vld [vmem:[#allocation5 + $0x8] sm:$0xff]
    %v77 = vld [vmem:[#allocation5 + $0x10] sm:$0xff]
    %v78 = vld [vmem:[#allocation5 + $0x18] sm:$0xff]
    %v79 = vld [vmem:[#allocation5 + $0x20] sm:$0xff]
    %v80 = vld [vmem:[#allocation5 + $0x28] sm:$0xff]
    %v81 = vld [vmem:[#allocation5 + $0x30] sm:$0xff]
    %v82 = vld [vmem:[#allocation5 + $0x38] sm:$0xff]
    %v83 = vld [vmem:[#allocation5 + $0x40] sm:$0xff]
    %v84 = vld [vmem:[#allocation5 + $0x48] sm:$0xff]
    %v85 = vld [vmem:[#allocation5 + $0x50] sm:$0xff]
    %v86 = vld [vmem:[#allocation5 + $0x58] sm:$0xff]
    %v87 = vld [vmem:[#allocation5 + $0x60] sm:$0xff]
    %v88 = vld [vmem:[#allocation5 + $0x68] sm:$0xff]
    %v89 = vld [vmem:[#allocation5 + $0x70] sm:$0xff]
    %v90 = vld [vmem:[#allocation5 + $0x78] sm:$0xff]
    %v91 = vld [vmem:[%s6] sm:$0x1]
    %v93 = vlaneseq
    %v94 = vshrl.u32 %v93, 7
    %v95 = vsub.s32 0, %v94
    %v96 = vrot.slane %v91, %v95
    %98 = vmatprep.subr.mxu0 0.0
    %99 = vmatpush1.msra.mxu0 %v75
    %100 = vmatprep.subr.mxu0 0.0
    %101 = vmatpush1.msra.mxu0 %v76
    %102 = vmatprep.subr.mxu0 0.0
    %103 = vmatpush1.msra.mxu0 %v77
    %104 = vmatprep.subr.mxu0 0.0
    %105 = vmatpush1.msra.mxu0 %v78
    %106 = vmatprep.subr.mxu0 0.0
    %107 = vmatpush1.msra.mxu0 %v79
    %108 = vmatprep.subr.mxu0 0.0
    %109 = vmatpush1.msra.mxu0 %v80
    %110 = vmatprep.subr.mxu0 0.0
    %111 = vmatpush1.msra.mxu0 %v81
    %112 = vmatprep.subr.mxu0 0.0
    %113 = vmatpush1.msra.mxu0 %v82
    %114 = vmatprep.subr.mxu0 0.0
    %115 = vmatpush1.msra.mxu0 %v83
    %116 = vmatprep.subr.mxu0 0.0
    %117 = vmatpush1.msra.mxu0 %v84
    %118 = vmatprep.subr.mxu0 0.0
    %119 = vmatpush1.msra.mxu0 %v85
    %120 = vmatprep.subr.mxu0 0.0
    %121 = vmatpush1.msra.mxu0 %v86
    %122 = vmatprep.subr.mxu0 0.0
    %123 = vmatpush1.msra.mxu0 %v87
    %124 = vmatprep.subr.mxu0 0.0
    %125 = vmatpush1.msra.mxu0 %v88
    %126 = vmatprep.subr.mxu0 0.0
    %127 = vmatpush1.msra.mxu0 %v89
    %128 = vmatprep.subr.mxu0 0.0
    %129 = vmatpush1.msra.mxu0 %v90
    %130 = vmatprep.subr.mxu0 0.0
    %131 = vmatpush1.msra.mxu0 0.0
    %132 = vmatprep.subr.mxu0 0.0
    %133 = vmatpush1.msra.mxu0 0.0
    %134 = vmatprep.subr.mxu0 0.0
    %135 = vmatpush1.msra.mxu0 0.0
    %136 = vmatprep.subr.mxu0 0.0
    %137 = vmatpush1.msra.mxu0 0.0
    %138 = vmatprep.subr.mxu0 0.0
    %139 = vmatpush1.msra.mxu0 0.0
    %140 = vmatprep.subr.mxu0 0.0
    %141 = vmatpush1.msra.mxu0 0.0
    %142 = vmatprep.subr.mxu0 0.0
    %143 = vmatpush1.msra.mxu0 0.0
    %144 = vmatprep.subr.mxu0 0.0
    %145 = vmatpush1.msra.mxu0 0.0
    %146 = vmatprep.subr.mxu0 0.0
    %147 = vmatpush1.msra.mxu0 0.0
    %148 = vmatprep.subr.mxu0 0.0
    %149 = vmatpush1.msra.mxu0 0.0
    %150 = vmatprep.subr.mxu0 0.0
    %151 = vmatpush1.msra.mxu0 0.0
    %152 = vmatprep.subr.mxu0 0.0
    %153 = vmatpush1.msra.mxu0 0.0
    %154 = vmatprep.subr.mxu0 0.0
    %155 = vmatpush1.msra.mxu0 0.0
    %156 = vmatprep.subr.mxu0 0.0
    %157 = vmatpush1.msra.mxu0 0.0
    %158 = vmatprep.subr.mxu0 0.0
    %159 = vmatpush1.msra.mxu0 0.0
    %160 = vmatprep.subr.mxu0 0.0
    %161 = vmatpush1.msra.mxu0 0.0
    %162 = vmatprep.mubr.f32.mxu0 0.0
    %163 = vmatmul.mubr.f32.gmra.mrb[0].mxu0 %v73
    %v164 = vpop.f32.mrb[0].mxu0
    %v165 = vadd.f32 %v96, %v164
    %v166 = vpop.f32.mrb[0].mxu0
    %167 = vmatprep.mubr.f32.mxu0 0.0
    %168 = vmatmul.mubr.f32.gmra.mrb[0].mxu0 %v74
    %v169 = vpop.f32.mrb[0].mxu0
    %v170 = vadd.f32 %v96, %v169
    %v171 = vpop.f32.mrb[0].mxu0
    %172 = vdwg.mxu0
    %v173 = vld [vmem:[%s1] sm:$0xff]
    %v174 = vld [vmem:[%s1 + $0x8] sm:$0xff]
    %s175 = sld [smem:[#allocation2]]
    %s176 = sld [smem:[#allocation2 + $0x1]]
    %s177 = sld [smem:[#allocation2 + $0x2]]
    %s178 = sld [smem:[#allocation2 + $0x3]]
    %s179 = sld [smem:[#allocation2 + $0x4]]
    %s180 = sld [smem:[#allocation2 + $0x5]]
    %s181 = sld [smem:[#allocation2 + $0x6]]
    %v182 = vstv %s175
    %v183 = vmul.f32 %v173, %v182
    %v184 = vmul.f32 %v174, %v182
    %v185 = vld [vmem:[%s3] sm:$0xff]
    %v186 = vld [vmem:[%s3 + $0x8] sm:$0xff]
    %v187 = vld [vmem:[%s3 + $0x10] sm:$0xff]
    %v188 = vld [vmem:[%s3 + $0x18] sm:$0xff]
    %v189 = vld [vmem:[%s3 + $0x20] sm:$0xff]
    %v190 = vld [vmem:[%s3 + $0x28] sm:$0xff]
    %v191 = vld [vmem:[%s3 + $0x30] sm:$0xff]
    %v192 = vld [vmem:[%s3 + $0x38] sm:$0xff]
    %v193 = vld [vmem:[%s3 + $0x40] sm:$0xff]
    %v194 = vld [vmem:[%s3 + $0x48] sm:$0xff]
    %v195 = vld [vmem:[%s3 + $0x50] sm:$0xff]
    %v196 = vld [vmem:[%s3 + $0x58] sm:$0xff]
    %v197 = vld [vmem:[%s3 + $0x60] sm:$0xff]
    %v198 = vld [vmem:[%s3 + $0x68] sm:$0xff]
    %v199 = vld [vmem:[%s3 + $0x70] sm:$0xff]
    %v200 = vld [vmem:[%s3 + $0x78] sm:$0xff]
    %201 = vmatprep.subr.mxu0 0.0
    %202 = vmatpush1.msra.mxu0 %v185
    %203 = vmatprep.subr.mxu0 0.0
    %204 = vmatpush1.msra.mxu0 %v186
    %205 = vmatprep.subr.mxu0 0.0
    %206 = vmatpush1.msra.mxu0 %v187
    %207 = vmatprep.subr.mxu0 0.0
    %208 = vmatpush1.msra.mxu0 %v188
    %209 = vmatprep.subr.mxu0 0.0
    %210 = vmatpush1.msra.mxu0 %v189
    %211 = vmatprep.subr.mxu0 0.0
    %212 = vmatpush1.msra.mxu0 %v190
    %213 = vmatprep.subr.mxu0 0.0
    %214 = vmatpush1.msra.mxu0 %v191
    %215 = vmatprep.subr.mxu0 0.0
    %216 = vmatpush1.msra.mxu0 %v192
    %217 = vmatprep.subr.mxu0 0.0
    %218 = vmatpush1.msra.mxu0 %v193
    %219 = vmatprep.subr.mxu0 0.0
    %220 = vmatpush1.msra.mxu0 %v194
    %221 = vmatprep.subr.mxu0 0.0
    %222 = vmatpush1.msra.mxu0 %v195
    %223 = vmatprep.subr.mxu0 0.0
    %224 = vmatpush1.msra.mxu0 %v196
    %225 = vmatprep.subr.mxu0 0.0
    %226 = vmatpush1.msra.mxu0 %v197
    %227 = vmatprep.subr.mxu0 0.0
    %228 = vmatpush1.msra.mxu0 %v198
    %229 = vmatprep.subr.mxu0 0.0
    %230 = vmatpush1.msra.mxu0 %v199
    %231 = vmatprep.subr.mxu0 0.0
    %232 = vmatpush1.msra.mxu0 %v200
    %233 = vmatprep.subr.mxu0 0.0
    %234 = vmatpush1.msra.mxu0 0.0
    %235 = vmatprep.subr.mxu0 0.0
    %236 = vmatpush1.msra.mxu0 0.0
    %237 = vmatprep.subr.mxu0 0.0
    %238 = vmatpush1.msra.mxu0 0.0
    %239 = vmatprep.subr.mxu0 0.0
    %240 = vmatpush1.msra.mxu0 0.0
    %241 = vmatprep.subr.mxu0 0.0
    %242 = vmatpush1.msra.mxu0 0.0
    %243 = vmatprep.subr.mxu0 0.0
    %244 = vmatpush1.msra.mxu0 0.0
    %245 = vmatprep.subr.mxu0 0.0
    %246 = vmatpush1.msra.mxu0 0.0
    %247 = vmatprep.subr.mxu0 0.0
    %248 = vmatpush1.msra.mxu0 0.0
    %249 = vmatprep.subr.mxu0 0.0
    %250 = vmatpush1.msra.mxu0 0.0
    %251 = vmatprep.subr.mxu0 0.0
    %252 = vmatpush1.msra.mxu0 0.0
    %253 = vmatprep.subr.mxu0 0.0
    %254 = vmatpush1.msra.mxu0 0.0
    %255 = vmatprep.subr.mxu0 0.0
    %256 = vmatpush1.msra.mxu0 0.0
    %257 = vmatprep.subr.mxu0 0.0
    %258 = vmatpush1.msra.mxu0 0.0
    %259 = vmatprep.subr.mxu0 0.0
    %260 = vmatpush1.msra.mxu0 0.0
    %261 = vmatprep.subr.mxu0 0.0
    %262 = vmatpush1.msra.mxu0 0.0
    %263 = vmatprep.subr.mxu0 0.0
    %264 = vmatpush1.msra.mxu0 0.0
    %265 = vmatprep.mubr.f32.mxu0 0.0
    %266 = vmatmul.mubr.f32.gmra.mrb[0].mxu0 %v183
    %v267 = vpop.f32.mrb[0].mxu0
    %v268 = vadd.f32 %v165, %v267
    %v269 = vpop.f32.mrb[0].mxu0
    %270 = vmatprep.mubr.f32.mxu0 0.0
    %271 = vmatmul.mubr.f32.gmra.mrb[0].mxu0 %v184
    %v272 = vpop.f32.mrb[0].mxu0
    %v273 = vadd.f32 %v170, %v272
    %v274 = vpop.f32.mrb[0].mxu0
    %275 = vdwg.mxu0
    %v276 = vld [vmem:[%s5] sm:$0x1]
    %v277 = vstv %s176
    %v278 = vmul.f32 %v277, %v276
    %v280 = vlaneseq
    %v281 = vshrl.u32 %v280, 7
    %v282 = vsub.s32 0, %v281
    %v283 = vrot.slane %v278, %v282
    %v285 = vadd.f32 %v268, %v283
    %v286 = vadd.f32 %v273, %v283
    %v287 = vmul.f32 %v285, %v285
    %v288 = vmul.f32 %v286, %v286
    %v289 = vmul.f32 %v285, %v287
    %v290 = vmul.f32 %v286, %v288
    %v291 = vmul.f32 %v289, 0.044715
    %v292 = vmul.f32 %v290, 0.044715
    %v293 = vadd.f32 %v285, %v291
    %v294 = vadd.f32 %v286, %v292
    %v295 = vmul.f32 %v293, 0.7978846
    %v296 = vmul.f32 %v294, 0.7978846
    %v297 = vtanh.pop %v295
    %v298 = vtanh.pop %v296
    %v299 = vadd.f32 %v297, 1.0
    %v300 = vadd.f32 %v298, 1.0
    %v301 = vmul.f32 %v299, 0.5
    %v302 = vmul.f32 %v300, 0.5
    %v303 = vmul.f32 %v285, %v301
    %v304 = vmul.f32 %v286, %v302
    %v305 = vld [vmem:[#allocation6] sm:$0xff]
    %v306 = vld [vmem:[#allocation6 + $0x8] sm:$0xff]
    %v307 = vld [vmem:[#allocation6 + $0x10] sm:$0xff]
    %v308 = vld [vmem:[#allocation6 + $0x18] sm:$0xff]
    %v309 = vld [vmem:[#allocation6 + $0x20] sm:$0xff]
    %v310 = vld [vmem:[#allocation6 + $0x28] sm:$0xff]
    %v311 = vld [vmem:[#allocation6 + $0x30] sm:$0xff]
    %v312 = vld [vmem:[#allocation6 + $0x38] sm:$0xff]
    %v313 = vld [vmem:[#allocation6 + $0x40] sm:$0xff]
    %v314 = vld [vmem:[#allocation6 + $0x48] sm:$0xff]
    %v315 = vld [vmem:[#allocation6 + $0x50] sm:$0xff]
    %v316 = vld [vmem:[#allocation6 + $0x58] sm:$0xff]
    %v317 = vld [vmem:[#allocation6 + $0x60] sm:$0xff]
    %v318 = vld [vmem:[#allocation6 + $0x68] sm:$0xff]
    %v319 = vld [vmem:[#allocation6 + $0x70] sm:$0xff]
    %v320 = vld [vmem:[#allocation6 + $0x78] sm:$0xff]
    %v321 = vld [vmem:[%s8] sm:$0x1]
    %v323 = vlaneseq
    %v324 = vshrl.u32 %v323, 7
    %v325 = vsub.s32 0, %v324
    %v326 = vrot.slane %v321, %v325
    %328 = vmatprep.subr.mxu0 0.0
    %329 = vmatpush1.msra.mxu0 %v305
    %330 = vmatprep.subr.mxu0 0.0
    %331 = vmatpush1.msra.mxu0 %v306
    %332 = vmatprep.subr.mxu0 0.0
    %333 = vmatpush1.msra.mxu0 %v307
    %334 = vmatprep.subr.mxu0 0.0
    %335 = vmatpush1.msra.mxu0 %v308
    %336 = vmatprep.subr.mxu0 0.0
    %337 = vmatpush1.msra.mxu0 %v309
    %338 = vmatprep.subr.mxu0 0.0
    %339 = vmatpush1.msra.mxu0 %v310
    %340 = vmatprep.subr.mxu0 0.0
    %341 = vmatpush1.msra.mxu0 %v311
    %342 = vmatprep.subr.mxu0 0.0
    %343 = vmatpush1.msra.mxu0 %v312
    %344 = vmatprep.subr.mxu0 0.0
    %345 = vmatpush1.msra.mxu0 %v313
    %346 = vmatprep.subr.mxu0 0.0
    %347 = vmatpush1.msra.mxu0 %v314
    %348 = vmatprep.subr.mxu0 0.0
    %349 = vmatpush1.msra.mxu0 %v315
    %350 = vmatprep.subr.mxu0 0.0
    %351 = vmatpush1.msra.mxu0 %v316
    %352 = vmatprep.subr.mxu0 0.0
    %353 = vmatpush1.msra.mxu0 %v317
    %354 = vmatprep.subr.mxu0 0.0
    %355 = vmatpush1.msra.mxu0 %v318
    %356 = vmatprep.subr.mxu0 0.0
    %357 = vmatpush1.msra.mxu0 %v319
    %358 = vmatprep.subr.mxu0 0.0
    %359 = vmatpush1.msra.mxu0 %v320
    %360 = vmatprep.subr.mxu0 0.0
    %361 = vmatpush1.msra.mxu0 0.0
    %362 = vmatprep.subr.mxu0 0.0
    %363 = vmatpush1.msra.mxu0 0.0
    %364 = vmatprep.subr.mxu0 0.0
    %365 = vmatpush1.msra.mxu0 0.0
    %366 = vmatprep.subr.mxu0 0.0
    %367 = vmatpush1.msra.mxu0 0.0
    %368 = vmatprep.subr.mxu0 0.0
    %369 = vmatpush1.msra.mxu0 0.0
    %370 = vmatprep.subr.mxu0 0.0
    %371 = vmatpush1.msra.mxu0 0.0
    %372 = vmatprep.subr.mxu0 0.0
    %373 = vmatpush1.msra.mxu0 0.0
    %374 = vmatprep.subr.mxu0 0.0
    %375 = vmatpush1.msra.mxu0 0.0
    %376 = vmatprep.subr.mxu0 0.0
    %377 = vmatpush1.msra.mxu0 0.0
    %378 = vmatprep.subr.mxu0 0.0
    %379 = vmatpush1.msra.mxu0 0.0
    %380 = vmatprep.subr.mxu0 0.0
    %381 = vmatpush1.msra.mxu0 0.0
    %382 = vmatprep.subr.mxu0 0.0
    %383 = vmatpush1.msra.mxu0 0.0
    %384 = vmatprep.subr.mxu0 0.0
    %385 = vmatpush1.msra.mxu0 0.0
    %386 = vmatprep.subr.mxu0 0.0
    %387 = vmatpush1.msra.mxu0 0.0
    %388 = vmatprep.subr.mxu0 0.0
    %389 = vmatpush1.msra.mxu0 0.0
    %390 = vmatprep.subr.mxu0 0.0
    %391 = vmatpush1.msra.mxu0 0.0
    %392 = vmatprep.mubr.f32.mxu0 0.0
    %393 = vmatmul.mubr.f32.gmra.mrb[0].mxu0 %v303
    %v394 = vpop.f32.mrb[0].mxu0
    %v395 = vadd.f32 %v326, %v394
    %v396 = vpop.f32.mrb[0].mxu0
    %397 = vmatprep.mubr.f32.mxu0 0.0
    %398 = vmatmul.mubr.f32.gmra.mrb[0].mxu0 %v304
    %v399 = vpop.f32.mrb[0].mxu0
    %v400 = vadd.f32 %v326, %v399
    %v401 = vpop.f32.mrb[0].mxu0
    %402 = vdwg.mxu0
    %v403 = vstv %s177
    %v404 = vmul.f32 %v403, %v173
    %v405 = vmul.f32 %v403, %v174
    %v406 = vstv %s178
    %v407 = vmul.f32 %v406, %v395
    %v408 = vmul.f32 %v406, %v400
    %v409 = vadd.f32 %v404, %v407
    %v410 = vadd.f32 %v405, %v408
    %v411 = vstv %s179
    %v412 = vmul.f32 %v411, %v173
    %v413 = vmul.f32 %v411, %v174
    %v414 = vstv %s180
    %v415 = vmul.f32 %v414, %v409
    %v416 = vmul.f32 %v414, %v410
    %v417 = vadd.f32 %v412, %v415
    %v418 = vadd.f32 %v413, %v416
    %v419 = vstv %s181
    %v420 = vmul.f32 %v419, 0.0
    %v421 = vadd.f32 %v417, %v420
    %v422 = vadd.f32 %v418, %v420
    %s423 = sld [smem:[#allocation2 + $0x80]]
    %s424 = sld [smem:[#allocation2 + $0x81]]
    %s425 = sld [smem:[#allocation2 + $0x82]]
    %s426 = sld [smem:[#allocation2 + $0x83]]
    %s427 = sld [smem:[#allocation2 + $0x84]]
    %s428 = sld [smem:[#allocation2 + $0x85]]
    %s429 = sld [smem:[#allocation2 + $0x86]]
    %v430 = vstv %s423
    %v431 = vmul.f32 %v421, %v430
    %v432 = vmul.f32 %v422, %v430
    %433 = vmatprep.subr.mxu0 0.0
    %434 = vmatpush1.msra.mxu0 %v185
    %435 = vmatprep.subr.mxu0 0.0
    %436 = vmatpush1.msra.mxu0 %v186
    %437 = vmatprep.subr.mxu0 0.0
    %438 = vmatpush1.msra.mxu0 %v187
    %439 = vmatprep.subr.mxu0 0.0
    %440 = vmatpush1.msra.mxu0 %v188
    %441 = vmatprep.subr.mxu0 0.0
    %442 = vmatpush1.msra.mxu0 %v189
    %443 = vmatprep.subr.mxu0 0.0
    %444 = vmatpush1.msra.mxu0 %v190
    %445 = vmatprep.subr.mxu0 0.0
    %446 = vmatpush1.msra.mxu0 %v191
    %447 = vmatprep.subr.mxu0 0.0
    %448 = vmatpush1.msra.mxu0 %v192
    %449 = vmatprep.subr.mxu0 0.0
    %450 = vmatpush1.msra.mxu0 %v193
    %451 = vmatprep.subr.mxu0 0.0
    %452 = vmatpush1.msra.mxu0 %v194
    %453 = vmatprep.subr.mxu0 0.0
    %454 = vmatpush1.msra.mxu0 %v195
    %455 = vmatprep.subr.mxu0 0.0
    %456 = vmatpush1.msra.mxu0 %v196
    %457 = vmatprep.subr.mxu0 0.0
    %458 = vmatpush1.msra.mxu0 %v197
    %459 = vmatprep.subr.mxu0 0.0
    %460 = vmatpush1.msra.mxu0 %v198
    %461 = vmatprep.subr.mxu0 0.0
    %462 = vmatpush1.msra.mxu0 %v199
    %463 = vmatprep.subr.mxu0 0.0
    %464 = vmatpush1.msra.mxu0 %v200
    %465 = vmatprep.subr.mxu0 0.0
    %466 = vmatpush1.msra.mxu0 0.0
    %467 = vmatprep.subr.mxu0 0.0
    %468 = vmatpush1.msra.mxu0 0.0
    %469 = vmatprep.subr.mxu0 0.0
    %470 = vmatpush1.msra.mxu0 0.0
    %471 = vmatprep.subr.mxu0 0.0
    %472 = vmatpush1.msra.mxu0 0.0
    %473 = vmatprep.subr.mxu0 0.0
    %474 = vmatpush1.msra.mxu0 0.0
    %475 = vmatprep.subr.mxu0 0.0
    %476 = vmatpush1.msra.mxu0 0.0
    %477 = vmatprep.subr.mxu0 0.0
    %478 = vmatpush1.msra.mxu0 0.0
    %479 = vmatprep.subr.mxu0 0.0
    %480 = vmatpush1.msra.mxu0 0.0
    %481 = vmatprep.subr.mxu0 0.0
    %482 = vmatpush1.msra.mxu0 0.0
    %483 = vmatprep.subr.mxu0 0.0
    %484 = vmatpush1.msra.mxu0 0.0
    %485 = vmatprep.subr.mxu0 0.0
    %486 = vmatpush1.msra.mxu0 0.0
    %487 = vmatprep.subr.mxu0 0.0
    %488 = vmatpush1.msra.mxu0 0.0
    %489 = vmatprep.subr.mxu0 0.0
    %490 = vmatpush1.msra.mxu0 0.0
    %491 = vmatprep.subr.mxu0 0.0
    %492 = vmatpush1.msra.mxu0 0.0
    %493 = vmatprep.subr.mxu0 0.0
    %494 = vmatpush1.msra.mxu0 0.0
    %495 = vmatprep.subr.mxu0 0.0
    %496 = vmatpush1.msra.mxu0 0.0
    %497 = vmatprep.mubr.f32.mxu0 0.0
    %498 = vmatmul.mubr.f32.gmra.mrb[0].mxu0 %v431
    %v499 = vpop.f32.mrb[0].mxu0
    %v500 = vadd.f32 %v165, %v499
    %v501 = vpop.f32.mrb[0].mxu0
    %502 = vmatprep.mubr.f32.mxu0 0.0
    %503 = vmatmul.mubr.f32.gmra.mrb[0].mxu0 %v432
    %v504 = vpop.f32.mrb[0].mxu0
    %v505 = vadd.f32 %v170, %v504
    %v506 = vpop.f32.mrb[0].mxu0
    %507 = vdwg.mxu0
    %v508 = vstv %s424
    %v509 = vmul.f32 %v508, %v276
    %v511 = vlaneseq
    %v512 = vshrl.u32 %v511, 7
    %v513 = vsub.s32 0, %v512
    %v514 = vrot.slane %v509, %v513
    %v516 = vadd.f32 %v500, %v514
    %v517 = vadd.f32 %v505, %v514
    %v518 = vmul.f32 %v516, %v516
    %v519 = vmul.f32 %v517, %v517
    %v520 = vmul.f32 %v516, %v518
    %v521 = vmul.f32 %v517, %v519
    %v522 = vmul.f32 %v520, 0.044715
    %v523 = vmul.f32 %v521, 0.044715
    %v524 = vadd.f32 %v516, %v522
    %v525 = vadd.f32 %v517, %v523
    %v526 = vmul.f32 %v524, 0.7978846
    %v527 = vmul.f32 %v525, 0.7978846
    %v528 = vtanh.pop %v526
    %v529 = vtanh.pop %v527
    %v530 = vadd.f32 %v528, 1.0
    %v531 = vadd.f32 %v529, 1.0
    %v532 = vmul.f32 %v530, 0.5
    %v533 = vmul.f32 %v531, 0.5
    %v534 = vmul.f32 %v516, %v532
    %v535 = vmul.f32 %v517, %v533
    %536 = vmatprep.subr.mxu0 0.0
    %537 = vmatpush1.msra.mxu0 %v305
    %538 = vmatprep.subr.mxu0 0.0
    %539 = vmatpush1.msra.mxu0 %v306
    %540 = vmatprep.subr.mxu0 0.0
    %541 = vmatpush1.msra.mxu0 %v307
    %542 = vmatprep.subr.mxu0 0.0
    %543 = vmatpush1.msra.mxu0 %v308
    %544 = vmatprep.subr.mxu0 0.0
    %545 = vmatpush1.msra.mxu0 %v309
    %546 = vmatprep.subr.mxu0 0.0
    %547 = vmatpush1.msra.mxu0 %v310
    %548 = vmatprep.subr.mxu0 0.0
    %549 = vmatpush1.msra.mxu0 %v311
    %550 = vmatprep.subr.mxu0 0.0
    %551 = vmatpush1.msra.mxu0 %v312
    %552 = vmatprep.subr.mxu0 0.0
    %553 = vmatpush1.msra.mxu0 %v313
    %554 = vmatprep.subr.mxu0 0.0
    %555 = vmatpush1.msra.mxu0 %v314
    %556 = vmatprep.subr.mxu0 0.0
    %557 = vmatpush1.msra.mxu0 %v315
    %558 = vmatprep.subr.mxu0 0.0
    %559 = vmatpush1.msra.mxu0 %v316
    %560 = vmatprep.subr.mxu0 0.0
    %561 = vmatpush1.msra.mxu0 %v317
    %562 = vmatprep.subr.mxu0 0.0
    %563 = vmatpush1.msra.mxu0 %v318
    %564 = vmatprep.subr.mxu0 0.0
    %565 = vmatpush1.msra.mxu0 %v319
    %566 = vmatprep.subr.mxu0 0.0
    %567 = vmatpush1.msra.mxu0 %v320
    %568 = vmatprep.subr.mxu0 0.0
    %569 = vmatpush1.msra.mxu0 0.0
    %570 = vmatprep.subr.mxu0 0.0
    %571 = vmatpush1.msra.mxu0 0.0
    %572 = vmatprep.subr.mxu0 0.0
    %573 = vmatpush1.msra.mxu0 0.0
    %574 = vmatprep.subr.mxu0 0.0
    %575 = vmatpush1.msra.mxu0 0.0
    %576 = vmatprep.subr.mxu0 0.0
    %577 = vmatpush1.msra.mxu0 0.0
    %578 = vmatprep.subr.mxu0 0.0
    %579 = vmatpush1.msra.mxu0 0.0
    %580 = vmatprep.subr.mxu0 0.0
    %581 = vmatpush1.msra.mxu0 0.0
    %582 = vmatprep.subr.mxu0 0.0
    %583 = vmatpush1.msra.mxu0 0.0
    %584 = vmatprep.subr.mxu0 0.0
    %585 = vmatpush1.msra.mxu0 0.0
    %586 = vmatprep.subr.mxu0 0.0
    %587 = vmatpush1.msra.mxu0 0.0
    %588 = vmatprep.subr.mxu0 0.0
    %589 = vmatpush1.msra.mxu0 0.0
    %590 = vmatprep.subr.mxu0 0.0
    %591 = vmatpush1.msra.mxu0 0.0
    %592 = vmatprep.subr.mxu0 0.0
    %593 = vmatpush1.msra.mxu0 0.0
    %594 = vmatprep.subr.mxu0 0.0
    %595 = vmatpush1.msra.mxu0 0.0
    %596 = vmatprep.subr.mxu0 0.0
    %597 = vmatpush1.msra.mxu0 0.0
    %598 = vmatprep.subr.mxu0 0.0
    %599 = vmatpush1.msra.mxu0 0.0
    %600 = vmatprep.mubr.f32.mxu0 0.0
    %601 = vmatmul.mubr.f32.gmra.mrb[0].mxu0 %v534
    %v602 = vpop.f32.mrb[0].mxu0
    %v603 = vadd.f32 %v326, %v602
    %v604 = vpop.f32.mrb[0].mxu0
    %605 = vmatprep.mubr.f32.mxu0 0.0
    %606 = vmatmul.mubr.f32.gmra.mrb[0].mxu0 %v535
    %v607 = vpop.f32.mrb[0].mxu0
    %v608 = vadd.f32 %v326, %v607
    %v609 = vpop.f32.mrb[0].mxu0
    %610 = vdwg.mxu0
    %v611 = vstv %s425
    %v612 = vmul.f32 %v611, %v421
    %v613 = vmul.f32 %v611, %v422
    %v614 = vstv %s426
    %v615 = vmul.f32 %v614, %v603
    %v616 = vmul.f32 %v614, %v608
    %v617 = vadd.f32 %v612, %v615
    %v618 = vadd.f32 %v613, %v616
    %v619 = vstv %s427
    %v620 = vmul.f32 %v619, %v421
    %v621 = vmul.f32 %v619, %v422
    %v622 = vstv %s428
    %v623 = vmul.f32 %v622, %v617
    %v624 = vmul.f32 %v622, %v618
    %v625 = vadd.f32 %v620, %v623
    %v626 = vadd.f32 %v621, %v624
    %v627 = vstv %s429
    %v628 = vmul.f32 %v627, %v409
    %v629 = vmul.f32 %v627, %v410
    %v630 = vadd.f32 %v625, %v628
    %v631 = vadd.f32 %v626, %v629
    %s632 = sld [smem:[#allocation2 + $0x100]]
    %s633 = sld [smem:[#allocation2 + $0x101]]
    %s634 = sld [smem:[#allocation2 + $0x102]]
    %s635 = sld [smem:[#allocation2 + $0x103]]
    %s636 = sld [smem:[#allocation2 + $0x104]]
    %s637 = sld [smem:[#allocation2 + $0x105]]
    %s638 = sld [smem:[#allocation2 + $0x106]]
    %v639 = vstv %s632
    %v640 = vmul.f32 %v630, %v639
    %v641 = vmul.f32 %v631, %v639
    %642 = vmatprep.subr.mxu0 0.0
    %643 = vmatpush1.msra.mxu0 %v185
    %644 = vmatprep.subr.mxu0 0.0
    %645 = vmatpush1.msra.mxu0 %v186
    %646 = vmatprep.subr.mxu0 0.0
    %647 = vmatpush1.msra.mxu0 %v187
    %648 = vmatprep.subr.mxu0 0.0
    %649 = vmatpush1.msra.mxu0 %v188
    %650 = vmatprep.subr.mxu0 0.0
    %651 = vmatpush1.msra.mxu0 %v189
    %652 = vmatprep.subr.mxu0 0.0
    %653 = vmatpush1.msra.mxu0 %v190
    %654 = vmatprep.subr.mxu0 0.0
    %655 = vmatpush1.msra.mxu0 %v191
    %656 = vmatprep.subr.mxu0 0.0
    %657 = vmatpush1.msra.mxu0 %v192
    %658 = vmatprep.subr.mxu0 0.0
    %659 = vmatpush1.msra.mxu0 %v193
    %660 = vmatprep.subr.mxu0 0.0
    %661 = vmatpush1.msra.mxu0 %v194
    %662 = vmatprep.subr.mxu0 0.0
    %663 = vmatpush1.msra.mxu0 %v195
    %664 = vmatprep.subr.mxu0 0.0
    %665 = vmatpush1.msra.mxu0 %v196
    %666 = vmatprep.subr.mxu0 0.0
    %667 = vmatpush1.msra.mxu0 %v197
    %668 = vmatprep.subr.mxu0 0.0
    %669 = vmatpush1.msra.mxu0 %v198
    %670 = vmatprep.subr.mxu0 0.0
    %671 = vmatpush1.msra.mxu0 %v199
    %672 = vmatprep.subr.mxu0 0.0
    %673 = vmatpush1.msra.mxu0 %v200
    %674 = vmatprep.subr.mxu0 0.0
    %675 = vmatpush1.msra.mxu0 0.0
    %676 = vmatprep.subr.mxu0 0.0
    %677 = vmatpush1.msra.mxu0 0.0
    %678 = vmatprep.subr.mxu0 0.0
    %679 = vmatpush1.msra.mxu0 0.0
    %680 = vmatprep.subr.mxu0 0.0
    %681 = vmatpush1.msra.mxu0 0.0
    %682 = vmatprep.subr.mxu0 0.0
    %683 = vmatpush1.msra.mxu0 0.0
    %684 = vmatprep.subr.mxu0 0.0
    %685 = vmatpush1.msra.mxu0 0.0
    %686 = vmatprep.subr.mxu0 0.0
    %687 = vmatpush1.msra.mxu0 0.0
    %688 = vmatprep.subr.mxu0 0.0
    %689 = vmatpush1.msra.mxu0 0.0
    %690 = vmatprep.subr.mxu0 0.0
    %691 = vmatpush1.msra.mxu0 0.0
    %692 = vmatprep.subr.mxu0 0.0
    %693 = vmatpush1.msra.mxu0 0.0
    %694 = vmatprep.subr.mxu0 0.0
    %695 = vmatpush1.msra.mxu0 0.0
    %696 = vmatprep.subr.mxu0 0.0
    %697 = vmatpush1.msra.mxu0 0.0
    %698 = vmatprep.subr.mxu0 0.0
    %699 = vmatpush1.msra.mxu0 0.0
    %700 = vmatprep.subr.mxu0 0.0
    %701 = vmatpush1.msra.mxu0 0.0
    %702 = vmatprep.subr.mxu0 0.0
    %703 = vmatpush1.msra.mxu0 0.0
    %704 = vmatprep.subr.mxu0 0.0
    %705 = vmatpush1.msra.mxu0 0.0
    %706 = vmatprep.mubr.f32.mxu0 0.0
    %707 = vmatmul.mubr.f32.gmra.mrb[0].mxu0 %v640
    %v708 = vpop.f32.mrb[0].mxu0
    %v709 = vadd.f32 %v165, %v708
    %v710 = vpop.f32.mrb[0].mxu0
    %711 = vmatprep.mubr.f32.mxu0 0.0
    %712 = vmatmul.mubr.f32.gmra.mrb[0].mxu0 %v641
    %v713 = vpop.f32.mrb[0].mxu0
    %v714 = vadd.f32 %v170, %v713
    %v715 = vpop.f32.mrb[0].mxu0
    %716 = vdwg.mxu0
    %v717 = vstv %s633
    %v718 = vmul.f32 %v717, %v276
    %v720 = vlaneseq
    %v721 = vshrl.u32 %v720, 7
    %v722 = vsub.s32 0, %v721
    %v723 = vrot.slane %v718, %v722
    %v725 = vadd.f32 %v709, %v723
    %v726 = vadd.f32 %v714, %v723
    %v727 = vmul.f32 %v725, %v725
    %v728 = vmul.f32 %v726, %v726
    %v729 = vmul.f32 %v725, %v727
    %v730 = vmul.f32 %v726, %v728
    %v731 = vmul.f32 %v729, 0.044715
    %v732 = vmul.f32 %v730, 0.044715
    %v733 = vadd.f32 %v725, %v731
    %v734 = vadd.f32 %v726, %v732
    %v735 = vmul.f32 %v733, 0.7978846
    %v736 = vmul.f32 %v734, 0.7978846
    %v737 = vtanh.pop %v735
    %v738 = vtanh.pop %v736
    %v739 = vadd.f32 %v737, 1.0
    %v740 = vadd.f32 %v738, 1.0
    %v741 = vmul.f32 %v739, 0.5
    %v742 = vmul.f32 %v740, 0.5
    %v743 = vmul.f32 %v725, %v741
    %v744 = vmul.f32 %v726, %v742
    %745 = vmatprep.subr.mxu0 0.0
    %746 = vmatpush1.msra.mxu0 %v305
    %747 = vmatprep.subr.mxu0 0.0
    %748 = vmatpush1.msra.mxu0 %v306
    %749 = vmatprep.subr.mxu0 0.0
    %750 = vmatpush1.msra.mxu0 %v307
    %751 = vmatprep.subr.mxu0 0.0
    %752 = vmatpush1.msra.mxu0 %v308
    %753 = vmatprep.subr.mxu0 0.0
    %754 = vmatpush1.msra.mxu0 %v309
    %755 = vmatprep.subr.mxu0 0.0
    %756 = vmatpush1.msra.mxu0 %v310
    %757 = vmatprep.subr.mxu0 0.0
    %758 = vmatpush1.msra.mxu0 %v311
    %759 = vmatprep.subr.mxu0 0.0
    %760 = vmatpush1.msra.mxu0 %v312
    %761 = vmatprep.subr.mxu0 0.0
    %762 = vmatpush1.msra.mxu0 %v313
    %763 = vmatprep.subr.mxu0 0.0
    %764 = vmatpush1.msra.mxu0 %v314
    %765 = vmatprep.subr.mxu0 0.0
    %766 = vmatpush1.msra.mxu0 %v315
    %767 = vmatprep.subr.mxu0 0.0
    %768 = vmatpush1.msra.mxu0 %v316
    %769 = vmatprep.subr.mxu0 0.0
    %770 = vmatpush1.msra.mxu0 %v317
    %771 = vmatprep.subr.mxu0 0.0
    %772 = vmatpush1.msra.mxu0 %v318
    %773 = vmatprep.subr.mxu0 0.0
    %774 = vmatpush1.msra.mxu0 %v319
    %775 = vmatprep.subr.mxu0 0.0
    %776 = vmatpush1.msra.mxu0 %v320
    %777 = vmatprep.subr.mxu0 0.0
    %778 = vmatpush1.msra.mxu0 0.0
    %779 = vmatprep.subr.mxu0 0.0
    %780 = vmatpush1.msra.mxu0 0.0
    %781 = vmatprep.subr.mxu0 0.0
    %782 = vmatpush1.msra.mxu0 0.0
    %783 = vmatprep.subr.mxu0 0.0
    %784 = vmatpush1.msra.mxu0 0.0
    %785 = vmatprep.subr.mxu0 0.0
    %786 = vmatpush1.msra.mxu0 0.0
    %787 = vmatprep.subr.mxu0 0.0
    %788 = vmatpush1.msra.mxu0 0.0
    %789 = vmatprep.subr.mxu0 0.0
    %790 = vmatpush1.msra.mxu0 0.0
    %791 = vmatprep.subr.mxu0 0.0
    %792 = vmatpush1.msra.mxu0 0.0
    %793 = vmatprep.subr.mxu0 0.0
    %794 = vmatpush1.msra.mxu0 0.0
    %795 = vmatprep.subr.mxu0 0.0
    %796 = vmatpush1.msra.mxu0 0.0
    %797 = vmatprep.subr.mxu0 0.0
    %798 = vmatpush1.msra.mxu0 0.0
    %799 = vmatprep.subr.mxu0 0.0
    %800 = vmatpush1.msra.mxu0 0.0
    %801 = vmatprep.subr.mxu0 0.0
    %802 = vmatpush1.msra.mxu0 0.0
    %803 = vmatprep.subr.mxu0 0.0
    %804 = vmatpush1.msra.mxu0 0.0
    %805 = vmatprep.subr.mxu0 0.0
    %806 = vmatpush1.msra.mxu0 0.0
    %807 = vmatprep.subr.mxu0 0.0
    %808 = vmatpush1.msra.mxu0 0.0
    %809 = vmatprep.mubr.f32.mxu0 0.0
    %810 = vmatmul.mubr.f32.gmra.mrb[0].mxu0 %v743
    %v811 = vpop.f32.mrb[0].mxu0
    %v812 = vadd.f32 %v326, %v811
    %v813 = vpop.f32.mrb[0].mxu0
    %814 = vmatprep.mubr.f32.mxu0 0.0
    %815 = vmatmul.mubr.f32.gmra.mrb[0].mxu0 %v744
    %v816 = vpop.f32.mrb[0].mxu0
    %v817 = vadd.f32 %v326, %v816
    %v818 = vpop.f32.mrb[0].mxu0
    %819 = vdwg.mxu0
    %v820 = vstv %s634
    %v821 = vmul.f32 %v820, %v630
    %v822 = vmul.f32 %v820, %v631
    %v823 = vstv %s635
    %v824 = vmul.f32 %v823, %v812
    %v825 = vmul.f32 %v823, %v817
    %v826 = vadd.f32 %v821, %v824
    %v827 = vadd.f32 %v822, %v825
    %v828 = vstv %s636
    %v829 = vmul.f32 %v828, %v630
    %v830 = vmul.f32 %v828, %v631
    %v831 = vstv %s637
    %v832 = vmul.f32 %v831, %v826
    %v833 = vmul.f32 %v831, %v827
    %v834 = vadd.f32 %v829, %v832
    %v835 = vadd.f32 %v830, %v833
    %v836 = vstv %s638
    %v837 = vmul.f32 %v836, %v617
    %v838 = vmul.f32 %v836, %v618
    %v839 = vadd.f32 %v834, %v837
    %v840 = vadd.f32 %v835, %v838
    %s841 = sld [smem:[#allocation2 + $0x180]]
    %s842 = sld [smem:[#allocation2 + $0x181]]
    %s843 = sld [smem:[#allocation2 + $0x182]]
    %s844 = sld [smem:[#allocation2 + $0x183]]
    %s845 = sld [smem:[#allocation2 + $0x184]]
    %s846 = sld [smem:[#allocation2 + $0x185]]
    %s847 = sld [smem:[#allocation2 + $0x186]]
    %v848 = vstv %s841
    %v849 = vmul.f32 %v839, %v848
    %v850 = vmul.f32 %v840, %v848
    %851 = vmatprep.subr.mxu0 0.0
    %852 = vmatpush1.msra.mxu0 %v185
    %853 = vmatprep.subr.mxu0 0.0
    %854 = vmatpush1.msra.mxu0 %v186
    %855 = vmatprep.subr.mxu0 0.0
    %856 = vmatpush1.msra.mxu0 %v187
    %857 = vmatprep.subr.mxu0 0.0
    %858 = vmatpush1.msra.mxu0 %v188
    %859 = vmatprep.subr.mxu0 0.0
    %860 = vmatpush1.msra.mxu0 %v189
    %861 = vmatprep.subr.mxu0 0.0
    %862 = vmatpush1.msra.mxu0 %v190
    %863 = vmatprep.subr.mxu0 0.0
    %864 = vmatpush1.msra.mxu0 %v191
    %865 = vmatprep.subr.mxu0 0.0
    %866 = vmatpush1.msra.mxu0 %v192
    %867 = vmatprep.subr.mxu0 0.0
    %868 = vmatpush1.msra.mxu0 %v193
    %869 = vmatprep.subr.mxu0 0.0
    %870 = vmatpush1.msra.mxu0 %v194
    %871 = vmatprep.subr.mxu0 0.0
    %872 = vmatpush1.msra.mxu0 %v195
    %873 = vmatprep.subr.mxu0 0.0
    %874 = vmatpush1.msra.mxu0 %v196
    %875 = vmatprep.subr.mxu0 0.0
    %876 = vmatpush1.msra.mxu0 %v197
    %877 = vmatprep.subr.mxu0 0.0
    %878 = vmatpush1.msra.mxu0 %v198
    %879 = vmatprep.subr.mxu0 0.0
    %880 = vmatpush1.msra.mxu0 %v199
    %881 = vmatprep.subr.mxu0 0.0
    %882 = vmatpush1.msra.mxu0 %v200
    %883 = vmatprep.subr.mxu0 0.0
    %884 = vmatpush1.msra.mxu0 0.0
    %885 = vmatprep.subr.mxu0 0.0
    %886 = vmatpush1.msra.mxu0 0.0
    %887 = vmatprep.subr.mxu0 0.0
    %888 = vmatpush1.msra.mxu0 0.0
    %889 = vmatprep.subr.mxu0 0.0
    %890 = vmatpush1.msra.mxu0 0.0
    %891 = vmatprep.subr.mxu0 0.0
    %892 = vmatpush1.msra.mxu0 0.0
    %893 = vmatprep.subr.mxu0 0.0
    %894 = vmatpush1.msra.mxu0 0.0
    %895 = vmatprep.subr.mxu0 0.0
    %896 = vmatpush1.msra.mxu0 0.0
    %897 = vmatprep.subr.mxu0 0.0
    %898 = vmatpush1.msra.mxu0 0.0
    %899 = vmatprep.subr.mxu0 0.0
    %900 = vmatpush1.msra.mxu0 0.0
    %901 = vmatprep.subr.mxu0 0.0
    %902 = vmatpush1.msra.mxu0 0.0
    %903 = vmatprep.subr.mxu0 0.0
    %904 = vmatpush1.msra.mxu0 0.0
    %905 = vmatprep.subr.mxu0 0.0
    %906 = vmatpush1.msra.mxu0 0.0
    %907 = vmatprep.subr.mxu0 0.0
    %908 = vmatpush1.msra.mxu0 0.0
    %909 = vmatprep.subr.mxu0 0.0
    %910 = vmatpush1.msra.mxu0 0.0
    %911 = vmatprep.subr.mxu0 0.0
    %912 = vmatpush1.msra.mxu0 0.0
    %913 = vmatprep.subr.mxu0 0.0
    %914 = vmatpush1.msra.mxu0 0.0
    %915 = vmatprep.mubr.f32.mxu0 0.0
    %916 = vmatmul.mubr.f32.gmra.mrb[0].mxu0 %v849
    %v917 = vpop.f32.mrb[0].mxu0
    %v918 = vadd.f32 %v165, %v917
    %v919 = vpop.f32.mrb[0].mxu0
    %920 = vmatprep.mubr.f32.mxu0 0.0
    %921 = vmatmul.mubr.f32.gmra.mrb[0].mxu0 %v850
    %v922 = vpop.f32.mrb[0].mxu0
    %v923 = vadd.f32 %v170, %v922
    %v924 = vpop.f32.mrb[0].mxu0
    %925 = vdwg.mxu0
    %v926 = vstv %s842
    %v927 = vmul.f32 %v926, %v276
    %v929 = vlaneseq
    %v930 = vshrl.u32 %v929, 7
    %v931 = vsub.s32 0, %v930
    %v932 = vrot.slane %v927, %v931
    %v934 = vadd.f32 %v918, %v932
    %v935 = vadd.f32 %v923, %v932
    %v936 = vmul.f32 %v934, %v934
    %v937 = vmul.f32 %v935, %v935
    %v938 = vmul.f32 %v934, %v936
    %v939 = vmul.f32 %v935, %v937
    %v940 = vmul.f32 %v938, 0.044715
    %v941 = vmul.f32 %v939, 0.044715
    %v942 = vadd.f32 %v934, %v940
    %v943 = vadd.f32 %v935, %v941
    %v944 = vmul.f32 %v942, 0.7978846
    %v945 = vmul.f32 %v943, 0.7978846
    %v946 = vtanh.pop %v944
    %v947 = vtanh.pop %v945
    %v948 = vadd.f32 %v946, 1.0
    %v949 = vadd.f32 %v947, 1.0
    %v950 = vmul.f32 %v948, 0.5
    %v951 = vmul.f32 %v949, 0.5
    %v952 = vmul.f32 %v934, %v950
    %v953 = vmul.f32 %v935, %v951
    %954 = vmatprep.subr.mxu0 0.0
    %955 = vmatpush1.msra.mxu0 %v305
    %956 = vmatprep.subr.mxu0 0.0
    %957 = vmatpush1.msra.mxu0 %v306
    %958 = vmatprep.subr.mxu0 0.0
    %959 = vmatpush1.msra.mxu0 %v307
    %960 = vmatprep.subr.mxu0 0.0
    %961 = vmatpush1.msra.mxu0 %v308
    %962 = vmatprep.subr.mxu0 0.0
    %963 = vmatpush1.msra.mxu0 %v309
    %964 = vmatprep.subr.mxu0 0.0
    %965 = vmatpush1.msra.mxu0 %v310
    %966 = vmatprep.subr.mxu0 0.0
    %967 = vmatpush1.msra.mxu0 %v311
    %968 = vmatprep.subr.mxu0 0.0
    %969 = vmatpush1.msra.mxu0 %v312
    %970 = vmatprep.subr.mxu0 0.0
    %971 = vmatpush1.msra.mxu0 %v313
    %972 = vmatprep.subr.mxu0 0.0
    %973 = vmatpush1.msra.mxu0 %v314
    %974 = vmatprep.subr.mxu0 0.0
    %975 = vmatpush1.msra.mxu0 %v315
    %976 = vmatprep.subr.mxu0 0.0
    %977 = vmatpush1.msra.mxu0 %v316
    %978 = vmatprep.subr.mxu0 0.0
    %979 = vmatpush1.msra.mxu0 %v317
    %980 = vmatprep.subr.mxu0 0.0
    %981 = vmatpush1.msra.mxu0 %v318
    %982 = vmatprep.subr.mxu0 0.0
    %983 = vmatpush1.msra.mxu0 %v319
    %984 = vmatprep.subr.mxu0 0.0
    %985 = vmatpush1.msra.mxu0 %v320
    %986 = vmatprep.subr.mxu0 0.0
    %987 = vmatpush1.msra.mxu0 0.0
    %988 = vmatprep.subr.mxu0 0.0
    %989 = vmatpush1.msra.mxu0 0.0
    %990 = vmatprep.subr.mxu0 0.0
    %991 = vmatpush1.msra.mxu0 0.0
    %992 = vmatprep.subr.mxu0 0.0
    %993 = vmatpush1.msra.mxu0 0.0
    %994 = vmatprep.subr.mxu0 0.0
    %995 = vmatpush1.msra.mxu0 0.0
    %996 = vmatprep.subr.mxu0 0.0
    %997 = vmatpush1.msra.mxu0 0.0
    %998 = vmatprep.subr.mxu0 0.0
    %999 = vmatpush1.msra.mxu0 0.0
    %1000 = vmatprep.subr.mxu0 0.0
    %1001 = vmatpush1.msra.mxu0 0.0
    %1002 = vmatprep.subr.mxu0 0.0
    %1003 = vmatpush1.msra.mxu0 0.0
    %1004 = vmatprep.subr.mxu0 0.0
    %1005 = vmatpush1.msra.mxu0 0.0
    %1006 = vmatprep.subr.mxu0 0.0
    %1007 = vmatpush1.msra.mxu0 0.0
    %1008 = vmatprep.subr.mxu0 0.0
    %1009 = vmatpush1.msra.mxu0 0.0
    %1010 = vmatprep.subr.mxu0 0.0
    %1011 = vmatpush1.msra.mxu0 0.0
    %1012 = vmatprep.subr.mxu0 0.0
    %1013 = vmatpush1.msra.mxu0 0.0
    %1014 = vmatprep.subr.mxu0 0.0
    %1015 = vmatpush1.msra.mxu0 0.0
    %1016 = vmatprep.subr.mxu0 0.0
    %1017 = vmatpush1.msra.mxu0 0.0
    %1018 = vmatprep.mubr.f32.mxu0 0.0
    %1019 = vmatmul.mubr.f32.gmra.mrb[0].mxu0 %v952
    %v1020 = vpop.f32.mrb[0].mxu0
    %v1021 = vadd.f32 %v326, %v1020
    %v1022 = vpop.f32.mrb[0].mxu0
    %1023 = vmatprep.mubr.f32.mxu0 0.0
    %1024 = vmatmul.mubr.f32.gmra.mrb[0].mxu0 %v953
    %v1025 = vpop.f32.mrb[0].mxu0
    %v1026 = vadd.f32 %v326, %v1025
    %v1027 = vpop.f32.mrb[0].mxu0
    %1028 = vdwg.mxu0
    %v1029 = vstv %s843
    %v1030 = vmul.f32 %v1029, %v839
    %v1031 = vmul.f32 %v1029, %v840
    %v1032 = vstv %s844
    %v1033 = vmul.f32 %v1032, %v1021
    %v1034 = vmul.f32 %v1032, %v1026
    %v1035 = vadd.f32 %v1030, %v1033
    %v1036 = vadd.f32 %v1031, %v1034
    %v1037 = vstv %s845
    %v1038 = vmul.f32 %v1037, %v839
    %v1039 = vmul.f32 %v1037, %v840
    %v1040 = vstv %s846
    %v1041 = vmul.f32 %v1040, %v1035
    %v1042 = vmul.f32 %v1040, %v1036
    %v1043 = vadd.f32 %v1038, %v1041
    %v1044 = vadd.f32 %v1039, %v1042
    %v1045 = vstv %s847
    %v1046 = vmul.f32 %v1045, %v826
    %v1047 = vmul.f32 %v1045, %v827
    %v1048 = vadd.f32 %v1043, %v1046
    %v1049 = vadd.f32 %v1044, %v1047
    %s1050 = sld [smem:[#allocation2 + $0x200]]
    %s1051 = sld [smem:[#allocation2 + $0x201]]
    %s1052 = sld [smem:[#allocation2 + $0x202]]
    %s1053 = sld [smem:[#allocation2 + $0x203]]
    %s1054 = sld [smem:[#allocation2 + $0x204]]
    %s1055 = sld [smem:[#allocation2 + $0x205]]
    %s1056 = sld [smem:[#allocation2 + $0x206]]
    %v1057 = vstv %s1050
    %v1058 = vmul.f32 %v1048, %v1057
    %v1059 = vmul.f32 %v1049, %v1057
    %1060 = vmatprep.subr.mxu0 0.0
    %1061 = vmatpush1.msra.mxu0 %v185
    %1062 = vmatprep.subr.mxu0 0.0
    %1063 = vmatpush1.msra.mxu0 %v186
    %1064 = vmatprep.subr.mxu0 0.0
    %1065 = vmatpush1.msra.mxu0 %v187
    %1066 = vmatprep.subr.mxu0 0.0
    %1067 = vmatpush1.msra.mxu0 %v188
    %1068 = vmatprep.subr.mxu0 0.0
    %1069 = vmatpush1.msra.mxu0 %v189
    %1070 = vmatprep.subr.mxu0 0.0
    %1071 = vmatpush1.msra.mxu0 %v190
    %1072 = vmatprep.subr.mxu0 0.0
    %1073 = vmatpush1.msra.mxu0 %v191
    %1074 = vmatprep.subr.mxu0 0.0
    %1075 = vmatpush1.msra.mxu0 %v192
    %1076 = vmatprep.subr.mxu0 0.0
    %1077 = vmatpush1.msra.mxu0 %v193
    %1078 = vmatprep.subr.mxu0 0.0
    %1079 = vmatpush1.msra.mxu0 %v194
    %1080 = vmatprep.subr.mxu0 0.0
    %1081 = vmatpush1.msra.mxu0 %v195
    %1082 = vmatprep.subr.mxu0 0.0
    %1083 = vmatpush1.msra.mxu0 %v196
    %1084 = vmatprep.subr.mxu0 0.0
    %1085 = vmatpush1.msra.mxu0 %v197
    %1086 = vmatprep.subr.mxu0 0.0
    %1087 = vmatpush1.msra.mxu0 %v198
    %1088 = vmatprep.subr.mxu0 0.0
    %1089 = vmatpush1.msra.mxu0 %v199
    %1090 = vmatprep.subr.mxu0 0.0
    %1091 = vmatpush1.msra.mxu0 %v200
    %1092 = vmatprep.subr.mxu0 0.0
    %1093 = vmatpush1.msra.mxu0 0.0
    %1094 = vmatprep.subr.mxu0 0.0
    %1095 = vmatpush1.msra.mxu0 0.0
    %1096 = vmatprep.subr.mxu0 0.0
    %1097 = vmatpush1.msra.mxu0 0.0
    %1098 = vmatprep.subr.mxu0 0.0
    %1099 = vmatpush1.msra.mxu0 0.0
    %1100 = vmatprep.subr.mxu0 0.0
    %1101 = vmatpush1.msra.mxu0 0.0
    %1102 = vmatprep.subr.mxu0 0.0
    %1103 = vmatpush1.msra.mxu0 0.0
    %1104 = vmatprep.subr.mxu0 0.0
    %1105 = vmatpush1.msra.mxu0 0.0
    %1106 = vmatprep.subr.mxu0 0.0
    %1107 = vmatpush1.msra.mxu0 0.0
    %1108 = vmatprep.subr.mxu0 0.0
    %1109 = vmatpush1.msra.mxu0 0.0
    %1110 = vmatprep.subr.mxu0 0.0
    %1111 = vmatpush1.msra.mxu0 0.0
    %1112 = vmatprep.subr.mxu0 0.0
    %1113 = vmatpush1.msra.mxu0 0.0
    %1114 = vmatprep.subr.mxu0 0.0
    %1115 = vmatpush1.msra.mxu0 0.0
    %1116 = vmatprep.subr.mxu0 0.0
    %1117 = vmatpush1.msra.mxu0 0.0
    %1118 = vmatprep.subr.mxu0 0.0
    %1119 = vmatpush1.msra.mxu0 0.0
    %1120 = vmatprep.subr.mxu0 0.0
    %1121 = vmatpush1.msra.mxu0 0.0
    %1122 = vmatprep.subr.mxu0 0.0
    %1123 = vmatpush1.msra.mxu0 0.0
    %1124 = vmatprep.mubr.f32.mxu0 0.0
    %1125 = vmatmul.mubr.f32.gmra.mrb[0].mxu0 %v1058
    %v1126 = vpop.f32.mrb[0].mxu0
    %v1127 = vadd.f32 %v165, %v1126
    %v1128 = vpop.f32.mrb[0].mxu0
    %1129 = vmatprep.mubr.f32.mxu0 0.0
    %1130 = vmatmul.mubr.f32.gmra.mrb[0].mxu0 %v1059
    %v1131 = vpop.f32.mrb[0].mxu0
    %v1132 = vadd.f32 %v170, %v1131
    %v1133 = vpop.f32.mrb[0].mxu0
    %1134 = vdwg.mxu0
    %v1135 = vstv %s1051
    %v1136 = vmul.f32 %v1135, %v276
    %v1138 = vlaneseq
    %v1139 = vshrl.u32 %v1138, 7
    %v1140 = vsub.s32 0, %v1139
    %v1141 = vrot.slane %v1136, %v1140
    %v1143 = vadd.f32 %v1127, %v1141
    %v1144 = vadd.f32 %v1132, %v1141
    %v1145 = vmul.f32 %v1143, %v1143
    %v1146 = vmul.f32 %v1144, %v1144
    %v1147 = vmul.f32 %v1143, %v1145
    %v1148 = vmul.f32 %v1144, %v1146
    %v1149 = vmul.f32 %v1147, 0.044715
    %v1150 = vmul.f32 %v1148, 0.044715
    %v1151 = vadd.f32 %v1143, %v1149
    %v1152 = vadd.f32 %v1144, %v1150
    %v1153 = vmul.f32 %v1151, 0.7978846
    %v1154 = vmul.f32 %v1152, 0.7978846
    %v1155 = vtanh.pop %v1153
    %v1156 = vtanh.pop %v1154
    %v1157 = vadd.f32 %v1155, 1.0
    %v1158 = vadd.f32 %v1156, 1.0
    %v1159 = vmul.f32 %v1157, 0.5
    %v1160 = vmul.f32 %v1158, 0.5
    %v1161 = vmul.f32 %v1143, %v1159
    %v1162 = vmul.f32 %v1144, %v1160
    %1163 = vmatprep.subr.mxu0 0.0
    %1164 = vmatpush1.msra.mxu0 %v305
    %1165 = vmatprep.subr.mxu0 0.0
    %1166 = vmatpush1.msra.mxu0 %v306
    %1167 = vmatprep.subr.mxu0 0.0
    %1168 = vmatpush1.msra.mxu0 %v307
    %1169 = vmatprep.subr.mxu0 0.0
    %1170 = vmatpush1.msra.mxu0 %v308
    %1171 = vmatprep.subr.mxu0 0.0
    %1172 = vmatpush1.msra.mxu0 %v309
    %1173 = vmatprep.subr.mxu0 0.0
    %1174 = vmatpush1.msra.mxu0 %v310
    %1175 = vmatprep.subr.mxu0 0.0
    %1176 = vmatpush1.msra.mxu0 %v311
    %1177 = vmatprep.subr.mxu0 0.0
    %1178 = vmatpush1.msra.mxu0 %v312
    %1179 = vmatprep.subr.mxu0 0.0
    %1180 = vmatpush1.msra.mxu0 %v313
    %1181 = vmatprep.subr.mxu0 0.0
    %1182 = vmatpush1.msra.mxu0 %v314
    %1183 = vmatprep.subr.mxu0 0.0
    %1184 = vmatpush1.msra.mxu0 %v315
    %1185 = vmatprep.subr.mxu0 0.0
    %1186 = vmatpush1.msra.mxu0 %v316
    %1187 = vmatprep.subr.mxu0 0.0
    %1188 = vmatpush1.msra.mxu0 %v317
    %1189 = vmatprep.subr.mxu0 0.0
    %1190 = vmatpush1.msra.mxu0 %v318
    %1191 = vmatprep.subr.mxu0 0.0
    %1192 = vmatpush1.msra.mxu0 %v319
    %1193 = vmatprep.subr.mxu0 0.0
    %1194 = vmatpush1.msra.mxu0 %v320
    %1195 = vmatprep.subr.mxu0 0.0
    %1196 = vmatpush1.msra.mxu0 0.0
    %1197 = vmatprep.subr.mxu0 0.0
    %1198 = vmatpush1.msra.mxu0 0.0
    %1199 = vmatprep.subr.mxu0 0.0
    %1200 = vmatpush1.msra.mxu0 0.0
    %1201 = vmatprep.subr.mxu0 0.0
    %1202 = vmatpush1.msra.mxu0 0.0
    %1203 = vmatprep.subr.mxu0 0.0
    %1204 = vmatpush1.msra.mxu0 0.0
    %1205 = vmatprep.subr.mxu0 0.0
    %1206 = vmatpush1.msra.mxu0 0.0
    %1207 = vmatprep.subr.mxu0 0.0
    %1208 = vmatpush1.msra.mxu0 0.0
    %1209 = vmatprep.subr.mxu0 0.0
    %1210 = vmatpush1.msra.mxu0 0.0
    %1211 = vmatprep.subr.mxu0 0.0
    %1212 = vmatpush1.msra.mxu0 0.0
    %1213 = vmatprep.subr.mxu0 0.0
    %1214 = vmatpush1.msra.mxu0 0.0
    %1215 = vmatprep.subr.mxu0 0.0
    %1216 = vmatpush1.msra.mxu0 0.0
    %1217 = vmatprep.subr.mxu0 0.0
    %1218 = vmatpush1.msra.mxu0 0.0
    %1219 = vmatprep.subr.mxu0 0.0
    %1220 = vmatpush1.msra.mxu0 0.0
    %1221 = vmatprep.subr.mxu0 0.0
    %1222 = vmatpush1.msra.mxu0 0.0
    %1223 = vmatprep.subr.mxu0 0.0
    %1224 = vmatpush1.msra.mxu0 0.0
    %1225 = vmatprep.subr.mxu0 0.0
    %1226 = vmatpush1.msra.mxu0 0.0
    %1227 = vmatprep.mubr.f32.mxu0 0.0
    %1228 = vmatmul.mubr.f32.gmra.mrb[0].mxu0 %v1161
    %v1229 = vpop.f32.mrb[0].mxu0
    %v1230 = vadd.f32 %v326, %v1229
    %v1231 = vpop.f32.mrb[0].mxu0
    %1232 = vmatprep.mubr.f32.mxu0 0.0
    %1233 = vmatmul.mubr.f32.gmra.mrb[0].mxu0 %v1162
    %v1234 = vpop.f32.mrb[0].mxu0
    %v1235 = vadd.f32 %v326, %v1234
    %v1236 = vpop.f32.mrb[0].mxu0
    %1237 = vdwg.mxu0
    %v1238 = vstv %s1052
    %v1239 = vmul.f32 %v1238, %v1048
    %v1240 = vmul.f32 %v1238, %v1049
    %v1241 = vstv %s1053
    %v1242 = vmul.f32 %v1241, %v1230
    %v1243 = vmul.f32 %v1241, %v1235
    %v1244 = vadd.f32 %v1239, %v1242
    %v1245 = vadd.f32 %v1240, %v1243
    %v1246 = vstv %s1054
    %v1247 = vmul.f32 %v1246, %v1048
    %v1248 = vmul.f32 %v1246, %v1049
    %v1249 = vstv %s1055
    %v1250 = vmul.f32 %v1249, %v1244
    %v1251 = vmul.f32 %v1249, %v1245
    %v1252 = vadd.f32 %v1247, %v1250
    %v1253 = vadd.f32 %v1248, %v1251
    %v1254 = vstv %s1056
    %v1255 = vmul.f32 %v1254, %v1035
    %v1256 = vmul.f32 %v1254, %v1036
    %v1257 = vadd.f32 %v1252, %v1255
    %v1258 = vadd.f32 %v1253, %v1256
    %1259 = vst [vmem:[%s9] sm:$0xff] %v1257
    %1260 = vst [vmem:[%s9 + $0x8] sm:$0xff] %v1258
    // Predicated region
    $region50: #{policy_act.1} parent=1 // pred_check
      _
    $region51: #{policy_act.1} parent=1 // pred_check_branch
      %1262 = sbr.rel (0) target = $region53
    $region52: #{policy_act.1} parent=1 // pred_region
      _
    $region53: #{policy_act.1} parent=1 // pred_fallthru
      _
    // Predicated region
    $region54: #{policy_act.1} parent=1 // pred_check
      _
    $region55: #{policy_act.1} parent=1 // pred_check_branch
      %1264 = sbr.rel (0) target = $region57
    $region56: #{policy_act.1} parent=1 // pred_region
      _
    $region57: #{policy_act.1} parent=1 // pred_fallthru
      _
    %1265 = vsyncpa [#allocation3], 1
    %1266 = vsyncpa [#allocation7], 1
    %1267 = vsyncpa [#allocation4], 1

</llo_original>
